<compile_context>
chip_gen: v5e
topology: v5e:2x2
jax: 0.10.0
libtpu: 0.0.40
codegen_flags: <defaults>
</compile_context>

<pallas_src>
import jax
import jax.numpy as jnp
from jax.experimental import pallas as pl
from jax.experimental.pallas import tpu as pltpu

IN_F, HID_F, OUT_F = 3, 10, 2   # logical sizes from the PyTorch module
HPAD = 128                      # lane-padded hidden width
TB = 256                        # batch tile (rows per grid step)


def _mlp_kernel(x_ref, w1_ref, b1_ref, w2_ref, b2_ref, w3_ref, b3_ref, o_ref):
    x = x_ref[...]              # (TB, 3)   float32
    w1 = w1_ref[...]            # (3, 128)  cols >= 10 are zero

    # ---- Layer 1 on the VPU: K = 3, so three broadcast multiply-adds ----
    acc = b1_ref[...]           # (1, 128) -> broadcasts over rows
    for j in range(IN_F):       # static unroll
        acc = acc + x[:, j:j + 1] * w1[j:j + 1, :]
    h1 = jax.nn.sigmoid(acc)    # (TB, 128); lanes >= 10 equal sigmoid(0)=0.5 but
                                # hit zero-padded rows of w2/w3 -> contribute 0.

    # ---- Layer 2: MXU matmul + sigmoid ----
    h2 = jax.nn.sigmoid(
        jnp.dot(h1, w2_ref[...], preferred_element_type=jnp.float32)
        + b2_ref[...])

    # ---- Layer 3: MXU matmul; store only the 2 real output lanes ----
    o = jnp.dot(h2, w3_ref[...], preferred_element_type=jnp.float32) + b3_ref[...]
    o_ref[...] = o[:, :OUT_F].astype(o_ref.dtype)


def _pad2d(a, rows, cols):
    return jnp.zeros((rows, cols), a.dtype).at[: a.shape[0], : a.shape[1]].set(a)


def pad_params(params):
    """Pad weights/biases to lane-aligned shapes ONCE (cache the result).

    Padding is zeros, which is what keeps the padded hidden lanes inert."""
    w1, b1, w2, b2, w3, b3 = params
    return (
        _pad2d(w1, IN_F, HPAD),          # (3, 128)
        _pad2d(b1[None, :], 1, HPAD),    # (1, 128)
        _pad2d(w2, HPAD, HPAD),          # (128, 128)
        _pad2d(b2[None, :], 1, HPAD),    # (1, 128)
        _pad2d(w3, HPAD, HPAD),          # (128, 128)
        _pad2d(b3[None, :], 1, HPAD),    # (1, 128)
    )


@jax.jit
def agent_forward(x, padded_params):
    """x: [B, 3] float32 -> [B, 2] float32, same semantics as Agent.forward."""
    w1p, b1p, w2p, b2p, w3p, b3p = padded_params
    B = x.shape[0]
    nb = (B + TB - 1) // TB          # fixed tile -> compiles bucket by TB, not B
    Bp = nb * TB
    xp = jnp.pad(x, ((0, Bp - B), (0, 0)))   # pad batch rows only (12 B/row)

    const = lambda shape: pl.BlockSpec(shape, lambda i: (0, 0))
    out = pl.pallas_call(
        _mlp_kernel,
        out_shape=jax.ShapeDtypeStruct((Bp, OUT_F), jnp.float32),
        grid=(nb,),
        in_specs=[
            pl.BlockSpec((TB, IN_F), lambda i: (i, 0)),   # x: batch-tiled, narrow
            const((IN_F, HPAD)),                          # w1 (resident)
            const((1, HPAD)),                             # b1
            const((HPAD, HPAD)),                          # w2
            const((1, HPAD)),                             # b2
            const((HPAD, HPAD)),                          # w3
            const((1, HPAD)),                             # b3
        ],
        out_specs=pl.BlockSpec((TB, OUT_F), lambda i: (i, 0)),  # narrow output
        compiler_params=pltpu.CompilerParams(
            dimension_semantics=("parallel",)),
    )(xp, w1p, b1p, w2p, b2p, w3p, b3p)

    return out[:B]


def init_params(key):
    """Deterministic init with PyTorch-Linear-style uniform bounds.

    Weights are stored as [in, out], so y = x @ W + b (== PyTorch x @ W.T)."""
    ks = jax.random.split(key, 6)

    def lin(kw, kb, fan_in, fan_out):
        bound = 1.0 / jnp.sqrt(fan_in)
        w = jax.random.uniform(kw, (fan_in, fan_out), jnp.float32, -bound, bound)
        b = jax.random.uniform(kb, (fan_out,), jnp.float32, -bound, bound)
        return w, b

    w1, b1 = lin(ks[0], ks[1], IN_F, HID_F)
    w2, b2 = lin(ks[2], ks[3], HID_F, HID_F)
    w3, b3 = lin(ks[4], ks[5], HID_F, OUT_F)
    return (w1, b1, w2, b2, w3, b3)


def reference_forward(x, params):
    w1, b1, w2, b2, w3, b3 = params
    h1 = jax.nn.sigmoid(x @ w1 + b1)
    h2 = jax.nn.sigmoid(h1 @ w2 + b2)
    return h2 @ w3 + b3


# TODO(synk): act/walk/jump/update_jump/check_collision are pygame/game-state
# logic with no tensor semantics; only the network forward pass is implemented.

if __name__ == "__main__":
    key = jax.random.PRNGKey(0)
    kx, kp = jax.random.split(key)
    params = init_params(kp)
    padded_params = pad_params(params)   # pad once, reuse every call

    # Batch of environment observations [block_x, y, speed]-like features.
    B = 8
    x = jax.random.uniform(kx, (B, IN_F), jnp.float32, 0.0, 1.0)

    y = agent_forward(x, padded_params)
    y = jax.block_until_ready(y)

    y_ref = reference_forward(x, params)
    assert y.shape == (B, OUT_F)
    assert jnp.allclose(y, y_ref, atol=1e-5, rtol=1e-5)

    print("KERNEL_OK")
</pallas_src>

<mosaic_0001>
module attributes {stable_mosaic.version = 11 : i64} {
  func.func @_mlp_kernel(%arg0: i32, %arg1: memref<256x3xf32, #tpu.memory_space<vmem>>, %arg2: memref<3x128xf32, #tpu.memory_space<vmem>>, %arg3: memref<1x128xf32, #tpu.memory_space<vmem>>, %arg4: memref<128x128xf32, #tpu.memory_space<vmem>>, %arg5: memref<1x128xf32, #tpu.memory_space<vmem>>, %arg6: memref<128x128xf32, #tpu.memory_space<vmem>>, %arg7: memref<1x128xf32, #tpu.memory_space<vmem>>, %arg8: memref<256x2xf32, #tpu.memory_space<vmem>>) attributes {dimension_semantics = [#tpu.dimension_semantics<parallel>], iteration_bounds = array<i64: 1>, scalar_prefetch = 0 : i64, scratch_operands = 0 : i64, tpu.core_type = #tpu.core_type<tc>, window_params = [{transform_indices = @transform_0, window_bounds = array<i64: 256, 3>}, {pipeline_mode = #tpu.pipeline_mode<synchronous>, transform_indices = @transform_1, window_bounds = array<i64: 3, 128>}, {pipeline_mode = #tpu.pipeline_mode<synchronous>, transform_indices = @transform_2, window_bounds = array<i64: 1, 128>}, {pipeline_mode = #tpu.pipeline_mode<synchronous>, transform_indices = @transform_3, window_bounds = array<i64: 128, 128>}, {pipeline_mode = #tpu.pipeline_mode<synchronous>, transform_indices = @transform_4, window_bounds = array<i64: 1, 128>}, {pipeline_mode = #tpu.pipeline_mode<synchronous>, transform_indices = @transform_5, window_bounds = array<i64: 128, 128>}, {pipeline_mode = #tpu.pipeline_mode<synchronous>, transform_indices = @transform_6, window_bounds = array<i64: 1, 128>}, {transform_indices = @transform_7, window_bounds = array<i64: 256, 2>}]} {
    %c0 = arith.constant 0 : index
    %c0_0 = arith.constant 0 : index
    %0 = vector.load %arg1[%c0, %c0_0] : memref<256x3xf32, #tpu.memory_space<vmem>>, vector<256x3xf32>
    %c0_1 = arith.constant 0 : index
    %c0_2 = arith.constant 0 : index
    %1 = vector.load %arg2[%c0_1, %c0_2] : memref<3x128xf32, #tpu.memory_space<vmem>>, vector<3x128xf32>
    %c0_3 = arith.constant 0 : index
    %c0_4 = arith.constant 0 : index
    %2 = vector.load %arg3[%c0_3, %c0_4] : memref<1x128xf32, #tpu.memory_space<vmem>>, vector<1x128xf32>
    %3 = vector.extract_strided_slice %0 {offsets = [0, 0], sizes = [256, 1], strides = [1, 1]} : vector<256x3xf32> to vector<256x1xf32>
    %4 = vector.extract_strided_slice %1 {offsets = [0, 0], sizes = [1, 128], strides = [1, 1]} : vector<3x128xf32> to vector<1x128xf32>
    %5 = vector.broadcast %3 : vector<256x1xf32> to vector<256x128xf32>
    %6 = vector.broadcast %4 : vector<1x128xf32> to vector<256x128xf32>
    %7 = arith.mulf %5, %6 : vector<256x128xf32>
    %8 = vector.broadcast %2 : vector<1x128xf32> to vector<256x128xf32>
    %9 = arith.addf %8, %7 : vector<256x128xf32>
    %10 = vector.extract_strided_slice %0 {offsets = [0, 1], sizes = [256, 1], strides = [1, 1]} : vector<256x3xf32> to vector<256x1xf32>
    %11 = vector.extract_strided_slice %1 {offsets = [1, 0], sizes = [1, 128], strides = [1, 1]} : vector<3x128xf32> to vector<1x128xf32>
    %12 = vector.broadcast %10 : vector<256x1xf32> to vector<256x128xf32>
    %13 = vector.broadcast %11 : vector<1x128xf32> to vector<256x128xf32>
    %14 = arith.mulf %12, %13 : vector<256x128xf32>
    %15 = arith.addf %9, %14 : vector<256x128xf32>
    %16 = vector.extract_strided_slice %0 {offsets = [0, 2], sizes = [256, 1], strides = [1, 1]} : vector<256x3xf32> to vector<256x1xf32>
    %17 = vector.extract_strided_slice %1 {offsets = [2, 0], sizes = [1, 128], strides = [1, 1]} : vector<3x128xf32> to vector<1x128xf32>
    %18 = vector.broadcast %16 : vector<256x1xf32> to vector<256x128xf32>
    %19 = vector.broadcast %17 : vector<1x128xf32> to vector<256x128xf32>
    %20 = arith.mulf %18, %19 : vector<256x128xf32>
    %21 = arith.addf %15, %20 : vector<256x128xf32>
    %22 = arith.negf %21 : vector<256x128xf32>
    %23 = math.exp %22 : vector<256x128xf32>
    %cst = arith.constant 1.000000e+00 : f32
    %24 = vector.broadcast %cst : f32 to vector<256x128xf32>
    %25 = arith.addf %24, %23 : vector<256x128xf32>
    %26 = arith.divf %24, %25 : vector<256x128xf32>
    %c0_5 = arith.constant 0 : index
    %c0_6 = arith.constant 0 : index
    %27 = vector.load %arg4[%c0_5, %c0_6] : memref<128x128xf32, #tpu.memory_space<vmem>>, vector<128x128xf32>
    %cst_7 = arith.constant dense<0.000000e+00> : vector<256x128xf32>
    %28 = tpu.matmul %26, %27, %cst_7 {dimension_numbers = #tpu.dot_dimension_numbers<[1], [0], [0], [1], [0, 0, 1, 1], [], []>} : vector<256x128xf32>, vector<128x128xf32>, vector<256x128xf32> -> vector<256x128xf32>
    %c0_8 = arith.constant 0 : index
    %c0_9 = arith.constant 0 : index
    %29 = vector.load %arg5[%c0_8, %c0_9] : memref<1x128xf32, #tpu.memory_space<vmem>>, vector<1x128xf32>
    %30 = vector.broadcast %29 : vector<1x128xf32> to vector<256x128xf32>
    %31 = arith.addf %28, %30 : vector<256x128xf32>
    %32 = arith.negf %31 : vector<256x128xf32>
    %33 = math.exp %32 : vector<256x128xf32>
    %cst_10 = arith.constant 1.000000e+00 : f32
    %34 = vector.broadcast %cst_10 : f32 to vector<256x128xf32>
    %35 = arith.addf %34, %33 : vector<256x128xf32>
    %36 = arith.divf %34, %35 : vector<256x128xf32>
    %c0_11 = arith.constant 0 : index
    %c0_12 = arith.constant 0 : index
    %37 = vector.load %arg6[%c0_11, %c0_12] : memref<128x128xf32, #tpu.memory_space<vmem>>, vector<128x128xf32>
    %cst_13 = arith.constant dense<0.000000e+00> : vector<256x128xf32>
    %38 = tpu.matmul %36, %37, %cst_13 {dimension_numbers = #tpu.dot_dimension_numbers<[1], [0], [0], [1], [0, 0, 1, 1], [], []>} : vector<256x128xf32>, vector<128x128xf32>, vector<256x128xf32> -> vector<256x128xf32>
    %c0_14 = arith.constant 0 : index
    %c0_15 = arith.constant 0 : index
    %39 = vector.load %arg7[%c0_14, %c0_15] : memref<1x128xf32, #tpu.memory_space<vmem>>, vector<1x128xf32>
    %40 = vector.broadcast %39 : vector<1x128xf32> to vector<256x128xf32>
    %41 = arith.addf %38, %40 : vector<256x128xf32>
    %42 = vector.extract_strided_slice %41 {offsets = [0, 0], sizes = [256, 2], strides = [1, 1]} : vector<256x128xf32> to vector<256x2xf32>
    %c0_16 = arith.constant 0 : index
    %c0_17 = arith.constant 0 : index
    %43 = vector.load %arg8[%c0_16, %c0_17] : memref<256x2xf32, #tpu.memory_space<vmem>>, vector<256x2xf32>
    tpu.vector_store %arg8[%c0_16, %c0_17], %42 {strides = array<i32>} : memref<256x2xf32, #tpu.memory_space<vmem>>, vector<256x2xf32>,
    return
  }
  func.func @transform_0(%arg0: i32) -> (i32, i32) {
    %c0_i32 = arith.constant 0 : i32
    %c0_i32_0 = arith.constant 0 : i32
    return %arg0, %c0_i32 : i32, i32
  }
  func.func @transform_1(%arg0: i32) -> (i32, i32) {
    %c0_i32 = arith.constant 0 : i32
    %c0_i32_0 = arith.constant 0 : i32
    %c0_i32_1 = arith.constant 0 : i32
    return %c0_i32, %c0_i32_0 : i32, i32
  }
  func.func @transform_2(%arg0: i32) -> (i32, i32) {
    %c0_i32 = arith.constant 0 : i32
    %c0_i32_0 = arith.constant 0 : i32
    %c0_i32_1 = arith.constant 0 : i32
    return %c0_i32, %c0_i32_0 : i32, i32
  }
  func.func @transform_3(%arg0: i32) -> (i32, i32) {
    %c0_i32 = arith.constant 0 : i32
    %c0_i32_0 = arith.constant 0 : i32
    %c0_i32_1 = arith.constant 0 : i32
    return %c0_i32, %c0_i32_0 : i32, i32
  }
  func.func @transform_4(%arg0: i32) -> (i32, i32) {
    %c0_i32 = arith.constant 0 : i32
    %c0_i32_0 = arith.constant 0 : i32
    %c0_i32_1 = arith.constant 0 : i32
    return %c0_i32, %c0_i32_0 : i32, i32
  }
  func.func @transform_5(%arg0: i32) -> (i32, i32) {
    %c0_i32 = arith.constant 0 : i32
    %c0_i32_0 = arith.constant 0 : i32
    %c0_i32_1 = arith.constant 0 : i32
    return %c0_i32, %c0_i32_0 : i32, i32
  }
  func.func @transform_6(%arg0: i32) -> (i32, i32) {
    %c0_i32 = arith.constant 0 : i32
    %c0_i32_0 = arith.constant 0 : i32
    %c0_i32_1 = arith.constant 0 : i32
    return %c0_i32, %c0_i32_0 : i32, i32
  }
  func.func @transform_7(%arg0: i32) -> (i32, i32) {
    %c0_i32 = arith.constant 0 : i32
    %c0_i32_0 = arith.constant 0 : i32
    return %arg0, %c0_i32 : i32, i32
  }
}

</mosaic_0001>

<llo_original>
// kernel: agent_forward.1
$region0: #{agent_forward.1}
  #allocation0 [shape = 'u32[]', space=smem, size = 0x4, offset = 0x4, fixed_abs, tag = 'smem constant byte address 0x4 - core index']
  #allocation1 [shape = 'u32[72,128]{1,0:T(1,128)}', space=vmem, size = 0x9000, scoped, tag = 'internal scratch']
  %s0 = inlined_call_operand.vmem [shape: f32[256,3], index: 0, kind: input, shape index: {}]
  %s1 = inlined_call_operand.vmem [shape: f32[3,128], index: 1, kind: input, shape index: {}]
  %s2 = inlined_call_operand.vmem [shape: f32[1,128], index: 2, kind: input, shape index: {}]
  %s3 = inlined_call_operand.vmem [shape: f32[128,128], index: 3, kind: input, shape index: {}]
  %s4 = inlined_call_operand.vmem [shape: f32[1,128], index: 4, kind: input, shape index: {}]
  %s5 = inlined_call_operand.vmem [shape: f32[128,128], index: 5, kind: input, shape index: {}]
  %s6 = inlined_call_operand.vmem [shape: f32[1,128], index: 6, kind: input, shape index: {}]
  %s7 = inlined_call_operand.vmem [shape: f32[256,2], index: 7, kind: output, shape index: {}]
  %s8 = sld [smem:[#allocation0]]
  $region38: #{agent_forward.1} parent=0
    _
  %s10 = ssub.s32 1, %s8
  %s11 = scalar_select 0, %s10, %s8
  // Predicated region
  $region2: #{agent_forward.1} parent=0 // pred_check
    _
  $region3: #{agent_forward.1} parent=0 // pred_check_branch
    %13 = sbr.rel (0) target = $region5
  $region4: #{agent_forward.1} parent=0 // pred_region
    _
  $region5: #{agent_forward.1} parent=0 // pred_fallthru
    _
  // Predicated region
  $region6: #{agent_forward.1} parent=0 // pred_check
    _
  $region7: #{agent_forward.1} parent=0 // pred_check_branch
    %15 = sbr.rel (0) target = $region9
  $region8: #{agent_forward.1} parent=0 // pred_region
    _
  $region9: #{agent_forward.1} parent=0 // pred_fallthru
    _
  // Predicated region
  $region10: #{agent_forward.1} parent=0 // pred_check
    _
  $region11: #{agent_forward.1} parent=0 // pred_check_branch
    %17 = sbr.rel (0) target = $region13
  $region12: #{agent_forward.1} parent=0 // pred_region
    _
  $region13: #{agent_forward.1} parent=0 // pred_fallthru
    _
  // Predicated region
  $region14: #{agent_forward.1} parent=0 // pred_check
    _
  $region15: #{agent_forward.1} parent=0 // pred_check_branch
    %19 = sbr.rel (0) target = $region17
  $region16: #{agent_forward.1} parent=0 // pred_region
    _
  $region17: #{agent_forward.1} parent=0 // pred_fallthru
    _
  // Predicated region
  $region18: #{agent_forward.1} parent=0 // pred_check
    _
  $region19: #{agent_forward.1} parent=0 // pred_check_branch
    %21 = sbr.rel (0) target = $region21
  $region20: #{agent_forward.1} parent=0 // pred_region
    _
  $region21: #{agent_forward.1} parent=0 // pred_fallthru
    _
  // Predicated region
  $region22: #{agent_forward.1} parent=0 // pred_check
    _
  $region23: #{agent_forward.1} parent=0 // pred_check_branch
    %23 = sbr.rel (0) target = $region25
  $region24: #{agent_forward.1} parent=0 // pred_region
    _
  $region25: #{agent_forward.1} parent=0 // pred_fallthru
    _
  // Predicated region
  $region26: #{agent_forward.1} parent=0 // pred_check
    _
  $region27: #{agent_forward.1} parent=0 // pred_check_branch
    %25 = sbr.rel (0) target = $region29
  $region28: #{agent_forward.1} parent=0 // pred_region
    _
  $region29: #{agent_forward.1} parent=0 // pred_fallthru
    _
  %v26 = vld [vmem:[%s0] sm:$0xff]
  %v27 = vld [vmem:[%s0 + $0x8] sm:$0xff]
  %v28 = vld [vmem:[%s0 + $0x10] sm:$0xff]
  %v29 = vld [vmem:[%s0 + $0x18] sm:$0xff]
  %v30 = vld [vmem:[%s0 + $0x20] sm:$0xff]
  %v31 = vld [vmem:[%s0 + $0x28] sm:$0xff]
  %v32 = vld [vmem:[%s0 + $0x30] sm:$0xff]
  %v33 = vld [vmem:[%s0 + $0x38] sm:$0xff]
  %v34 = vld [vmem:[%s0 + $0x40] sm:$0xff]
  %v35 = vld [vmem:[%s0 + $0x48] sm:$0xff]
  %v36 = vld [vmem:[%s0 + $0x50] sm:$0xff]
  %v37 = vld [vmem:[%s0 + $0x58] sm:$0xff]
  %v38 = vld [vmem:[%s0 + $0x60] sm:$0xff]
  %v39 = vld [vmem:[%s0 + $0x68] sm:$0xff]
  %v40 = vld [vmem:[%s0 + $0x70] sm:$0xff]
  %v41 = vld [vmem:[%s0 + $0x78] sm:$0xff]
  %v42 = vld [vmem:[%s0 + $0x80] sm:$0xff]
  %v43 = vld [vmem:[%s0 + $0x88] sm:$0xff]
  %v44 = vld [vmem:[%s0 + $0x90] sm:$0xff]
  %v45 = vld [vmem:[%s0 + $0x98] sm:$0xff]
  %v46 = vld [vmem:[%s0 + $0xa0] sm:$0xff]
  %v47 = vld [vmem:[%s0 + $0xa8] sm:$0xff]
  %v48 = vld [vmem:[%s0 + $0xb0] sm:$0xff]
  %v49 = vld [vmem:[%s0 + $0xb8] sm:$0xff]
  %v50 = vld [vmem:[%s0 + $0xc0] sm:$0xff]
  %v51 = vld [vmem:[%s0 + $0xc8] sm:$0xff]
  %v52 = vld [vmem:[%s0 + $0xd0] sm:$0xff]
  %v53 = vld [vmem:[%s0 + $0xd8] sm:$0xff]
  %v54 = vld [vmem:[%s0 + $0xe0] sm:$0xff]
  %v55 = vld [vmem:[%s0 + $0xe8] sm:$0xff]
  %v56 = vld [vmem:[%s0 + $0xf0] sm:$0xff]
  %v57 = vld [vmem:[%s0 + $0xf8] sm:$0xff]
  %v58 = vld [vmem:[%s1] sm:$0x7]
  %v59 = vld [vmem:[%s2] sm:$0x1]
  %61 = vset.pattern.permute.xlu0 0
  %62 = vperm.xlu0 %61, %v26
  %v63 = vpop.permute.xlu0 %62
  %66 = vset.pattern.permute.xlu0 0
  %67 = vperm.xlu0 %66, %v27
  %v68 = vpop.permute.xlu0 %67
  %71 = vset.pattern.permute.xlu0 0
  %72 = vperm.xlu0 %71, %v28
  %v73 = vpop.permute.xlu0 %72
  %76 = vset.pattern.permute.xlu0 0
  %77 = vperm.xlu0 %76, %v29
  %v78 = vpop.permute.xlu0 %77
  %81 = vset.pattern.permute.xlu0 0
  %82 = vperm.xlu0 %81, %v30
  %v83 = vpop.permute.xlu0 %82
  %86 = vset.pattern.permute.xlu0 0
  %87 = vperm.xlu0 %86, %v31
  %v88 = vpop.permute.xlu0 %87
  %91 = vset.pattern.permute.xlu0 0
  %92 = vperm.xlu0 %91, %v32
  %v93 = vpop.permute.xlu0 %92
  %96 = vset.pattern.permute.xlu0 0
  %97 = vperm.xlu0 %96, %v33
  %v98 = vpop.permute.xlu0 %97
  %101 = vset.pattern.permute.xlu0 0
  %102 = vperm.xlu0 %101, %v34
  %v103 = vpop.permute.xlu0 %102
  %106 = vset.pattern.permute.xlu0 0
  %107 = vperm.xlu0 %106, %v35
  %v108 = vpop.permute.xlu0 %107
  %111 = vset.pattern.permute.xlu0 0
  %112 = vperm.xlu0 %111, %v36
  %v113 = vpop.permute.xlu0 %112
  %116 = vset.pattern.permute.xlu0 0
  %117 = vperm.xlu0 %116, %v37
  %v118 = vpop.permute.xlu0 %117
  %121 = vset.pattern.permute.xlu0 0
  %122 = vperm.xlu0 %121, %v38
  %v123 = vpop.permute.xlu0 %122
  %126 = vset.pattern.permute.xlu0 0
  %127 = vperm.xlu0 %126, %v39
  %v128 = vpop.permute.xlu0 %127
  %131 = vset.pattern.permute.xlu0 0
  %132 = vperm.xlu0 %131, %v40
  %v133 = vpop.permute.xlu0 %132
  %136 = vset.pattern.permute.xlu0 0
  %137 = vperm.xlu0 %136, %v41
  %v138 = vpop.permute.xlu0 %137
  %141 = vset.pattern.permute.xlu0 0
  %142 = vperm.xlu0 %141, %v42
  %v143 = vpop.permute.xlu0 %142
  %146 = vset.pattern.permute.xlu0 0
  %147 = vperm.xlu0 %146, %v43
  %v148 = vpop.permute.xlu0 %147
  %151 = vset.pattern.permute.xlu0 0
  %152 = vperm.xlu0 %151, %v44
  %v153 = vpop.permute.xlu0 %152
  %156 = vset.pattern.permute.xlu0 0
  %157 = vperm.xlu0 %156, %v45
  %v158 = vpop.permute.xlu0 %157
  %161 = vset.pattern.permute.xlu0 0
  %162 = vperm.xlu0 %161, %v46
  %v163 = vpop.permute.xlu0 %162
  %166 = vset.pattern.permute.xlu0 0
  %167 = vperm.xlu0 %166, %v47
  %v168 = vpop.permute.xlu0 %167
  %171 = vset.pattern.permute.xlu0 0
  %172 = vperm.xlu0 %171, %v48
  %v173 = vpop.permute.xlu0 %172
  %176 = vset.pattern.permute.xlu0 0
  %177 = vperm.xlu0 %176, %v49
  %v178 = vpop.permute.xlu0 %177
  %181 = vset.pattern.permute.xlu0 0
  %182 = vperm.xlu0 %181, %v50
  %v183 = vpop.permute.xlu0 %182
  %186 = vset.pattern.permute.xlu0 0
  %187 = vperm.xlu0 %186, %v51
  %v188 = vpop.permute.xlu0 %187
  %191 = vset.pattern.permute.xlu0 0
  %192 = vperm.xlu0 %191, %v52
  %v193 = vpop.permute.xlu0 %192
  %196 = vset.pattern.permute.xlu0 0
  %197 = vperm.xlu0 %196, %v53
  %v198 = vpop.permute.xlu0 %197
  %201 = vset.pattern.permute.xlu0 0
  %202 = vperm.xlu0 %201, %v54
  %v203 = vpop.permute.xlu0 %202
  %206 = vset.pattern.permute.xlu0 0
  %207 = vperm.xlu0 %206, %v55
  %v208 = vpop.permute.xlu0 %207
  %211 = vset.pattern.permute.xlu0 0
  %212 = vperm.xlu0 %211, %v56
  %v213 = vpop.permute.xlu0 %212
  %216 = vset.pattern.permute.xlu0 0
  %217 = vperm.xlu0 %216, %v57
  %v218 = vpop.permute.xlu0 %217
  %v220 = vperm.slane %v58, 0
  %v221 = vmul.f32 %v63, %v220
  %v222 = vmul.f32 %v68, %v220
  %v223 = vmul.f32 %v73, %v220
  %v224 = vmul.f32 %v78, %v220
  %v225 = vmul.f32 %v83, %v220
  %v226 = vmul.f32 %v88, %v220
  %v227 = vmul.f32 %v93, %v220
  %v228 = vmul.f32 %v98, %v220
  %v229 = vmul.f32 %v103, %v220
  %v230 = vmul.f32 %v108, %v220
  %v231 = vmul.f32 %v113, %v220
  %v232 = vmul.f32 %v118, %v220
  %v233 = vmul.f32 %v123, %v220
  %v234 = vmul.f32 %v128, %v220
  %v235 = vmul.f32 %v133, %v220
  %v236 = vmul.f32 %v138, %v220
  %v237 = vmul.f32 %v143, %v220
  %v238 = vmul.f32 %v148, %v220
  %v239 = vmul.f32 %v153, %v220
  %v240 = vmul.f32 %v158, %v220
  %v241 = vmul.f32 %v163, %v220
  %v242 = vmul.f32 %v168, %v220
  %v243 = vmul.f32 %v173, %v220
  %v244 = vmul.f32 %v178, %v220
  %v245 = vmul.f32 %v183, %v220
  %v246 = vmul.f32 %v188, %v220
  %v247 = vmul.f32 %v193, %v220
  %v248 = vmul.f32 %v198, %v220
  %v249 = vmul.f32 %v203, %v220
  %v250 = vmul.f32 %v208, %v220
  %v251 = vmul.f32 %v213, %v220
  %v252 = vmul.f32 %v218, %v220
  %v254 = vperm.slane %v59, 0
  %v256 = vadd.f32 %v254, %v221
  %v257 = vadd.f32 %v254, %v222
  %v258 = vadd.f32 %v254, %v223
  %v259 = vadd.f32 %v254, %v224
  %v260 = vadd.f32 %v254, %v225
  %v261 = vadd.f32 %v254, %v226
  %v262 = vadd.f32 %v254, %v227
  %v263 = vadd.f32 %v254, %v228
  %v264 = vadd.f32 %v254, %v229
  %v265 = vadd.f32 %v254, %v230
  %v266 = vadd.f32 %v254, %v231
  %v267 = vadd.f32 %v254, %v232
  %v268 = vadd.f32 %v254, %v233
  %v269 = vadd.f32 %v254, %v234
  %v270 = vadd.f32 %v254, %v235
  %v271 = vadd.f32 %v254, %v236
  %v272 = vadd.f32 %v254, %v237
  %v273 = vadd.f32 %v254, %v238
  %v274 = vadd.f32 %v254, %v239
  %v275 = vadd.f32 %v254, %v240
  %v276 = vadd.f32 %v254, %v241
  %v277 = vadd.f32 %v254, %v242
  %v278 = vadd.f32 %v254, %v243
  %v279 = vadd.f32 %v254, %v244
  %v280 = vadd.f32 %v254, %v245
  %v281 = vadd.f32 %v254, %v246
  %v282 = vadd.f32 %v254, %v247
  %v283 = vadd.f32 %v254, %v248
  %v284 = vadd.f32 %v254, %v249
  %v285 = vadd.f32 %v254, %v250
  %v286 = vadd.f32 %v254, %v251
  %v287 = vadd.f32 %v254, %v252
  %288 = vset.pattern.permute.xlu0 1
  %289 = vperm.xlu0 %288, %v26
  %v290 = vpop.permute.xlu0 %289
  %292 = vset.pattern.permute.xlu0 1
  %293 = vperm.xlu0 %292, %v27
  %v294 = vpop.permute.xlu0 %293
  %296 = vset.pattern.permute.xlu0 1
  %297 = vperm.xlu0 %296, %v28
  %v298 = vpop.permute.xlu0 %297
  %300 = vset.pattern.permute.xlu0 1
  %301 = vperm.xlu0 %300, %v29
  %v302 = vpop.permute.xlu0 %301
  %304 = vset.pattern.permute.xlu0 1
  %305 = vperm.xlu0 %304, %v30
  %v306 = vpop.permute.xlu0 %305
  %308 = vset.pattern.permute.xlu0 1
  %309 = vperm.xlu0 %308, %v31
  %v310 = vpop.permute.xlu0 %309
  %312 = vset.pattern.permute.xlu0 1
  %313 = vperm.xlu0 %312, %v32
  %v314 = vpop.permute.xlu0 %313
  %316 = vset.pattern.permute.xlu0 1
  %317 = vperm.xlu0 %316, %v33
  %v318 = vpop.permute.xlu0 %317
  %320 = vset.pattern.permute.xlu0 1
  %321 = vperm.xlu0 %320, %v34
  %v322 = vpop.permute.xlu0 %321
  %324 = vset.pattern.permute.xlu0 1
  %325 = vperm.xlu0 %324, %v35
  %v326 = vpop.permute.xlu0 %325
  %328 = vset.pattern.permute.xlu0 1
  %329 = vperm.xlu0 %328, %v36
  %v330 = vpop.permute.xlu0 %329
  %332 = vset.pattern.permute.xlu0 1
  %333 = vperm.xlu0 %332, %v37
  %v334 = vpop.permute.xlu0 %333
  %336 = vset.pattern.permute.xlu0 1
  %337 = vperm.xlu0 %336, %v38
  %v338 = vpop.permute.xlu0 %337
  %340 = vset.pattern.permute.xlu0 1
  %341 = vperm.xlu0 %340, %v39
  %v342 = vpop.permute.xlu0 %341
  %344 = vset.pattern.permute.xlu0 1
  %345 = vperm.xlu0 %344, %v40
  %v346 = vpop.permute.xlu0 %345
  %348 = vset.pattern.permute.xlu0 1
  %349 = vperm.xlu0 %348, %v41
  %v350 = vpop.permute.xlu0 %349
  %352 = vset.pattern.permute.xlu0 1
  %353 = vperm.xlu0 %352, %v42
  %v354 = vpop.permute.xlu0 %353
  %356 = vset.pattern.permute.xlu0 1
  %357 = vperm.xlu0 %356, %v43
  %v358 = vpop.permute.xlu0 %357
  %360 = vset.pattern.permute.xlu0 1
  %361 = vperm.xlu0 %360, %v44
  %v362 = vpop.permute.xlu0 %361
  %364 = vset.pattern.permute.xlu0 1
  %365 = vperm.xlu0 %364, %v45
  %v366 = vpop.permute.xlu0 %365
  %368 = vset.pattern.permute.xlu0 1
  %369 = vperm.xlu0 %368, %v46
  %v370 = vpop.permute.xlu0 %369
  %372 = vset.pattern.permute.xlu0 1
  %373 = vperm.xlu0 %372, %v47
  %v374 = vpop.permute.xlu0 %373
  %376 = vset.pattern.permute.xlu0 1
  %377 = vperm.xlu0 %376, %v48
  %v378 = vpop.permute.xlu0 %377
  %380 = vset.pattern.permute.xlu0 1
  %381 = vperm.xlu0 %380, %v49
  %v382 = vpop.permute.xlu0 %381
  %384 = vset.pattern.permute.xlu0 1
  %385 = vperm.xlu0 %384, %v50
  %v386 = vpop.permute.xlu0 %385
  %388 = vset.pattern.permute.xlu0 1
  %389 = vperm.xlu0 %388, %v51
  %v390 = vpop.permute.xlu0 %389
  %392 = vset.pattern.permute.xlu0 1
  %393 = vperm.xlu0 %392, %v52
  %v394 = vpop.permute.xlu0 %393
  %396 = vset.pattern.permute.xlu0 1
  %397 = vperm.xlu0 %396, %v53
  %v398 = vpop.permute.xlu0 %397
  %400 = vset.pattern.permute.xlu0 1
  %401 = vperm.xlu0 %400, %v54
  %v402 = vpop.permute.xlu0 %401
  %404 = vset.pattern.permute.xlu0 1
  %405 = vperm.xlu0 %404, %v55
  %v406 = vpop.permute.xlu0 %405
  %408 = vset.pattern.permute.xlu0 1
  %409 = vperm.xlu0 %408, %v56
  %v410 = vpop.permute.xlu0 %409
  %412 = vset.pattern.permute.xlu0 1
  %413 = vperm.xlu0 %412, %v57
  %v414 = vpop.permute.xlu0 %413
  %v416 = vperm.slane %v58, 1
  %v417 = vmul.f32 %v290, %v416
  %v418 = vmul.f32 %v294, %v416
  %v419 = vmul.f32 %v298, %v416
  %v420 = vmul.f32 %v302, %v416
  %v421 = vmul.f32 %v306, %v416
  %v422 = vmul.f32 %v310, %v416
  %v423 = vmul.f32 %v314, %v416
  %v424 = vmul.f32 %v318, %v416
  %v425 = vmul.f32 %v322, %v416
  %v426 = vmul.f32 %v326, %v416
  %v427 = vmul.f32 %v330, %v416
  %v428 = vmul.f32 %v334, %v416
  %v429 = vmul.f32 %v338, %v416
  %v430 = vmul.f32 %v342, %v416
  %v431 = vmul.f32 %v346, %v416
  %v432 = vmul.f32 %v350, %v416
  %v433 = vmul.f32 %v354, %v416
  %v434 = vmul.f32 %v358, %v416
  %v435 = vmul.f32 %v362, %v416
  %v436 = vmul.f32 %v366, %v416
  %v437 = vmul.f32 %v370, %v416
  %v438 = vmul.f32 %v374, %v416
  %v439 = vmul.f32 %v378, %v416
  %v440 = vmul.f32 %v382, %v416
  %v441 = vmul.f32 %v386, %v416
  %v442 = vmul.f32 %v390, %v416
  %v443 = vmul.f32 %v394, %v416
  %v444 = vmul.f32 %v398, %v416
  %v445 = vmul.f32 %v402, %v416
  %v446 = vmul.f32 %v406, %v416
  %v447 = vmul.f32 %v410, %v416
  %v448 = vmul.f32 %v414, %v416
  %v449 = vadd.f32 %v256, %v417
  %v450 = vadd.f32 %v257, %v418
  %v451 = vadd.f32 %v258, %v419
  %v452 = vadd.f32 %v259, %v420
  %v453 = vadd.f32 %v260, %v421
  %v454 = vadd.f32 %v261, %v422
  %v455 = vadd.f32 %v262, %v423
  %v456 = vadd.f32 %v263, %v424
  %v457 = vadd.f32 %v264, %v425
  %v458 = vadd.f32 %v265, %v426
  %v459 = vadd.f32 %v266, %v427
  %v460 = vadd.f32 %v267, %v428
  %v461 = vadd.f32 %v268, %v429
  %v462 = vadd.f32 %v269, %v430
  %v463 = vadd.f32 %v270, %v431
  %v464 = vadd.f32 %v271, %v432
  %v465 = vadd.f32 %v272, %v433
  %v466 = vadd.f32 %v273, %v434
  %v467 = vadd.f32 %v274, %v435
  %v468 = vadd.f32 %v275, %v436
  %v469 = vadd.f32 %v276, %v437
  %v470 = vadd.f32 %v277, %v438
  %v471 = vadd.f32 %v278, %v439
  %v472 = vadd.f32 %v279, %v440
  %v473 = vadd.f32 %v280, %v441
  %v474 = vadd.f32 %v281, %v442
  %v475 = vadd.f32 %v282, %v443
  %v476 = vadd.f32 %v283, %v444
  %v477 = vadd.f32 %v284, %v445
  %v478 = vadd.f32 %v285, %v446
  %v479 = vadd.f32 %v286, %v447
  %v480 = vadd.f32 %v287, %v448
  %481 = vset.pattern.permute.xlu0 2
  %482 = vperm.xlu0 %481, %v26
  %v483 = vpop.permute.xlu0 %482
  %485 = vset.pattern.permute.xlu0 2
  %486 = vperm.xlu0 %485, %v27
  %v487 = vpop.permute.xlu0 %486
  %489 = vset.pattern.permute.xlu0 2
  %490 = vperm.xlu0 %489, %v28
  %v491 = vpop.permute.xlu0 %490
  %493 = vset.pattern.permute.xlu0 2
  %494 = vperm.xlu0 %493, %v29
  %v495 = vpop.permute.xlu0 %494
  %497 = vset.pattern.permute.xlu0 2
  %498 = vperm.xlu0 %497, %v30
  %v499 = vpop.permute.xlu0 %498
  %501 = vset.pattern.permute.xlu0 2
  %502 = vperm.xlu0 %501, %v31
  %v503 = vpop.permute.xlu0 %502
  %505 = vset.pattern.permute.xlu0 2
  %506 = vperm.xlu0 %505, %v32
  %v507 = vpop.permute.xlu0 %506
  %509 = vset.pattern.permute.xlu0 2
  %510 = vperm.xlu0 %509, %v33
  %v511 = vpop.permute.xlu0 %510
  %513 = vset.pattern.permute.xlu0 2
  %514 = vperm.xlu0 %513, %v34
  %v515 = vpop.permute.xlu0 %514
  %517 = vset.pattern.permute.xlu0 2
  %518 = vperm.xlu0 %517, %v35
  %v519 = vpop.permute.xlu0 %518
  %521 = vset.pattern.permute.xlu0 2
  %522 = vperm.xlu0 %521, %v36
  %v523 = vpop.permute.xlu0 %522
  %525 = vset.pattern.permute.xlu0 2
  %526 = vperm.xlu0 %525, %v37
  %v527 = vpop.permute.xlu0 %526
  %529 = vset.pattern.permute.xlu0 2
  %530 = vperm.xlu0 %529, %v38
  %v531 = vpop.permute.xlu0 %530
  %533 = vset.pattern.permute.xlu0 2
  %534 = vperm.xlu0 %533, %v39
  %v535 = vpop.permute.xlu0 %534
  %537 = vset.pattern.permute.xlu0 2
  %538 = vperm.xlu0 %537, %v40
  %v539 = vpop.permute.xlu0 %538
  %541 = vset.pattern.permute.xlu0 2
  %542 = vperm.xlu0 %541, %v41
  %v543 = vpop.permute.xlu0 %542
  %545 = vset.pattern.permute.xlu0 2
  %546 = vperm.xlu0 %545, %v42
  %v547 = vpop.permute.xlu0 %546
  %549 = vset.pattern.permute.xlu0 2
  %550 = vperm.xlu0 %549, %v43
  %v551 = vpop.permute.xlu0 %550
  %553 = vset.pattern.permute.xlu0 2
  %554 = vperm.xlu0 %553, %v44
  %v555 = vpop.permute.xlu0 %554
  %557 = vset.pattern.permute.xlu0 2
  %558 = vperm.xlu0 %557, %v45
  %v559 = vpop.permute.xlu0 %558
  %561 = vset.pattern.permute.xlu0 2
  %562 = vperm.xlu0 %561, %v46
  %v563 = vpop.permute.xlu0 %562
  %565 = vset.pattern.permute.xlu0 2
  %566 = vperm.xlu0 %565, %v47
  %v567 = vpop.permute.xlu0 %566
  %569 = vset.pattern.permute.xlu0 2
  %570 = vperm.xlu0 %569, %v48
  %v571 = vpop.permute.xlu0 %570
  %573 = vset.pattern.permute.xlu0 2
  %574 = vperm.xlu0 %573, %v49
  %v575 = vpop.permute.xlu0 %574
  %577 = vset.pattern.permute.xlu0 2
  %578 = vperm.xlu0 %577, %v50
  %v579 = vpop.permute.xlu0 %578
  %581 = vset.pattern.permute.xlu0 2
  %582 = vperm.xlu0 %581, %v51
  %v583 = vpop.permute.xlu0 %582
  %585 = vset.pattern.permute.xlu0 2
  %586 = vperm.xlu0 %585, %v52
  %v587 = vpop.permute.xlu0 %586
  %589 = vset.pattern.permute.xlu0 2
  %590 = vperm.xlu0 %589, %v53
  %v591 = vpop.permute.xlu0 %590
  %593 = vset.pattern.permute.xlu0 2
  %594 = vperm.xlu0 %593, %v54
  %v595 = vpop.permute.xlu0 %594
  %597 = vset.pattern.permute.xlu0 2
  %598 = vperm.xlu0 %597, %v55
  %v599 = vpop.permute.xlu0 %598
  %601 = vset.pattern.permute.xlu0 2
  %602 = vperm.xlu0 %601, %v56
  %v603 = vpop.permute.xlu0 %602
  %605 = vset.pattern.permute.xlu0 2
  %606 = vperm.xlu0 %605, %v57
  %v607 = vpop.permute.xlu0 %606
  %v609 = vperm.slane %v58, 2
  %v610 = vmul.f32 %v483, %v609
  %v611 = vmul.f32 %v487, %v609
  %v612 = vmul.f32 %v491, %v609
  %v613 = vmul.f32 %v495, %v609
  %v614 = vmul.f32 %v499, %v609
  %v615 = vmul.f32 %v503, %v609
  %v616 = vmul.f32 %v507, %v609
  %v617 = vmul.f32 %v511, %v609
  %v618 = vmul.f32 %v515, %v609
  %v619 = vmul.f32 %v519, %v609
  %v620 = vmul.f32 %v523, %v609
  %v621 = vmul.f32 %v527, %v609
  %v622 = vmul.f32 %v531, %v609
  %v623 = vmul.f32 %v535, %v609
  %v624 = vmul.f32 %v539, %v609
  %v625 = vmul.f32 %v543, %v609
  %v626 = vmul.f32 %v547, %v609
  %v627 = vmul.f32 %v551, %v609
  %v628 = vmul.f32 %v555, %v609
  %v629 = vmul.f32 %v559, %v609
  %v630 = vmul.f32 %v563, %v609
  %v631 = vmul.f32 %v567, %v609
  %v632 = vmul.f32 %v571, %v609
  %v633 = vmul.f32 %v575, %v609
  %v634 = vmul.f32 %v579, %v609
  %v635 = vmul.f32 %v583, %v609
  %v636 = vmul.f32 %v587, %v609
  %v637 = vmul.f32 %v591, %v609
  %v638 = vmul.f32 %v595, %v609
  %v639 = vmul.f32 %v599, %v609
  %v640 = vmul.f32 %v603, %v609
  %v641 = vmul.f32 %v607, %v609
  %v642 = vadd.f32 %v449, %v610
  %v643 = vadd.f32 %v450, %v611
  %v644 = vadd.f32 %v451, %v612
  %v645 = vadd.f32 %v452, %v613
  %v646 = vadd.f32 %v453, %v614
  %v647 = vadd.f32 %v454, %v615
  %v648 = vadd.f32 %v455, %v616
  %v649 = vadd.f32 %v456, %v617
  %v650 = vadd.f32 %v457, %v618
  %v651 = vadd.f32 %v458, %v619
  %v652 = vadd.f32 %v459, %v620
  %v653 = vadd.f32 %v460, %v621
  %v654 = vadd.f32 %v461, %v622
  %v655 = vadd.f32 %v462, %v623
  %v656 = vadd.f32 %v463, %v624
  %v657 = vadd.f32 %v464, %v625
  %v658 = vadd.f32 %v465, %v626
  %v659 = vadd.f32 %v466, %v627
  %v660 = vadd.f32 %v467, %v628
  %v661 = vadd.f32 %v468, %v629
  %v662 = vadd.f32 %v469, %v630
  %v663 = vadd.f32 %v470, %v631
  %v664 = vadd.f32 %v471, %v632
  %v665 = vadd.f32 %v472, %v633
  %v666 = vadd.f32 %v473, %v634
  %v667 = vadd.f32 %v474, %v635
  %v668 = vadd.f32 %v475, %v636
  %v669 = vadd.f32 %v476, %v637
  %v670 = vadd.f32 %v477, %v638
  %v671 = vadd.f32 %v478, %v639
  %v672 = vadd.f32 %v479, %v640
  %v673 = vadd.f32 %v480, %v641
  %v674 = vxor.u32 %v642, 2147483648
  %v675 = vxor.u32 %v643, 2147483648
  %v676 = vxor.u32 %v644, 2147483648
  %v677 = vxor.u32 %v645, 2147483648
  %v678 = vxor.u32 %v646, 2147483648
  %v679 = vxor.u32 %v647, 2147483648
  %v680 = vxor.u32 %v648, 2147483648
  %v681 = vxor.u32 %v649, 2147483648
  %v682 = vxor.u32 %v650, 2147483648
  %v683 = vxor.u32 %v651, 2147483648
  %v684 = vxor.u32 %v652, 2147483648
  %v685 = vxor.u32 %v653, 2147483648
  %v686 = vxor.u32 %v654, 2147483648
  %v687 = vxor.u32 %v655, 2147483648
  %v688 = vxor.u32 %v656, 2147483648
  %v689 = vxor.u32 %v657, 2147483648
  %v690 = vxor.u32 %v658, 2147483648
  %v691 = vxor.u32 %v659, 2147483648
  %v692 = vxor.u32 %v660, 2147483648
  %v693 = vxor.u32 %v661, 2147483648
  %v694 = vxor.u32 %v662, 2147483648
  %v695 = vxor.u32 %v663, 2147483648
  %v696 = vxor.u32 %v664, 2147483648
  %v697 = vxor.u32 %v665, 2147483648
  %v698 = vxor.u32 %v666, 2147483648
  %v699 = vxor.u32 %v667, 2147483648
  %v700 = vxor.u32 %v668, 2147483648
  %v701 = vxor.u32 %v669, 2147483648
  %v702 = vxor.u32 %v670, 2147483648
  %v703 = vxor.u32 %v671, 2147483648
  %v704 = vxor.u32 %v672, 2147483648
  %v705 = vxor.u32 %v673, 2147483648
  %v706 = vmul.f32 %v674, 1.442695
  %v707 = vpow.pop %v706
  %v708 = vmul.f32 %v675, 1.442695
  %v709 = vpow.pop %v708
  %v710 = vmul.f32 %v676, 1.442695
  %v711 = vpow.pop %v710
  %v712 = vmul.f32 %v677, 1.442695
  %v713 = vpow.pop %v712
  %v714 = vmul.f32 %v678, 1.442695
  %v715 = vpow.pop %v714
  %v716 = vmul.f32 %v679, 1.442695
  %v717 = vpow.pop %v716
  %v718 = vmul.f32 %v680, 1.442695
  %v719 = vpow.pop %v718
  %v720 = vmul.f32 %v681, 1.442695
  %v721 = vpow.pop %v720
  %v722 = vmul.f32 %v682, 1.442695
  %v723 = vpow.pop %v722
  %v724 = vmul.f32 %v683, 1.442695
  %v725 = vpow.pop %v724
  %v726 = vmul.f32 %v684, 1.442695
  %v727 = vpow.pop %v726
  %v728 = vmul.f32 %v685, 1.442695
  %v729 = vpow.pop %v728
  %v730 = vmul.f32 %v686, 1.442695
  %v731 = vpow.pop %v730
  %v732 = vmul.f32 %v687, 1.442695
  %v733 = vpow.pop %v732
  %v734 = vmul.f32 %v688, 1.442695
  %v735 = vpow.pop %v734
  %v736 = vmul.f32 %v689, 1.442695
  %v737 = vpow.pop %v736
  %v738 = vmul.f32 %v690, 1.442695
  %v739 = vpow.pop %v738
  %v740 = vmul.f32 %v691, 1.442695
  %v741 = vpow.pop %v740
  %v742 = vmul.f32 %v692, 1.442695
  %v743 = vpow.pop %v742
  %v744 = vmul.f32 %v693, 1.442695
  %v745 = vpow.pop %v744
  %v746 = vmul.f32 %v694, 1.442695
  %v747 = vpow.pop %v746
  %v748 = vmul.f32 %v695, 1.442695
  %v749 = vpow.pop %v748
  %v750 = vmul.f32 %v696, 1.442695
  %v751 = vpow.pop %v750
  %v752 = vmul.f32 %v697, 1.442695
  %v753 = vpow.pop %v752
  %v754 = vmul.f32 %v698, 1.442695
  %v755 = vpow.pop %v754
  %v756 = vmul.f32 %v699, 1.442695
  %v757 = vpow.pop %v756
  %v758 = vmul.f32 %v700, 1.442695
  %v759 = vpow.pop %v758
  %v760 = vmul.f32 %v701, 1.442695
  %v761 = vpow.pop %v760
  %v762 = vmul.f32 %v702, 1.442695
  %v763 = vpow.pop %v762
  %v764 = vmul.f32 %v703, 1.442695
  %v765 = vpow.pop %v764
  %v766 = vmul.f32 %v704, 1.442695
  %v767 = vpow.pop %v766
  %v768 = vmul.f32 %v705, 1.442695
  %v769 = vpow.pop %v768
  %v770 = vadd.f32 %v707, 1.0
  %v771 = vadd.f32 %v709, 1.0
  %v772 = vadd.f32 %v711, 1.0
  %v773 = vadd.f32 %v713, 1.0
  %v774 = vadd.f32 %v715, 1.0
  %v775 = vadd.f32 %v717, 1.0
  %v776 = vadd.f32 %v719, 1.0
  %v777 = vadd.f32 %v721, 1.0
  %v778 = vadd.f32 %v723, 1.0
  %v779 = vadd.f32 %v725, 1.0
  %v780 = vadd.f32 %v727, 1.0
  %v781 = vadd.f32 %v729, 1.0
  %v782 = vadd.f32 %v731, 1.0
  %v783 = vadd.f32 %v733, 1.0
  %v784 = vadd.f32 %v735, 1.0
  %v785 = vadd.f32 %v737, 1.0
  %v786 = vadd.f32 %v739, 1.0
  %v787 = vadd.f32 %v741, 1.0
  %v788 = vadd.f32 %v743, 1.0
  %v789 = vadd.f32 %v745, 1.0
  %v790 = vadd.f32 %v747, 1.0
  %v791 = vadd.f32 %v749, 1.0
  %v792 = vadd.f32 %v751, 1.0
  %v793 = vadd.f32 %v753, 1.0
  %v794 = vadd.f32 %v755, 1.0
  %v795 = vadd.f32 %v757, 1.0
  %v796 = vadd.f32 %v759, 1.0
  %v797 = vadd.f32 %v761, 1.0
  %v798 = vadd.f32 %v763, 1.0
  %v799 = vadd.f32 %v765, 1.0
  %v800 = vadd.f32 %v767, 1.0
  %v801 = vadd.f32 %v769, 1.0
  %v802 = vrcp.pop %v770
  %v803 = vmul.f32 %v770, %v802
  %v804 = vsub.f32 1.0, %v803
  %v805 = vmul.f32 %v802, %v804
  %v806 = vadd.f32 %v802, %v805
  %vm807 = vweird.f32 %v770
  %vm808 = vweird.f32 %v802
  %vm809 = vmor %vm807, %vm808
  %v810 = vsel %vm809, %v802, %v806
  %v811 = vand.u32 2147483647, %v770
  %vm812 = vcmp.eq.f32.partialorder %v811, 8.507059e+37
  %v813 = vand.u32 %v770, 2147483648
  %v814 = vor.u32 1.1754944e-38, %v813
  %v815 = vsel %vm812, %v814, %v810
  %v816 = vmul.f32 1.0, %v815
  %v817 = vrcp.pop %v771
  %v818 = vmul.f32 %v771, %v817
  %v819 = vsub.f32 1.0, %v818
  %v820 = vmul.f32 %v817, %v819
  %v821 = vadd.f32 %v817, %v820
  %vm822 = vweird.f32 %v771
  %vm823 = vweird.f32 %v817
  %vm824 = vmor %vm822, %vm823
  %v825 = vsel %vm824, %v817, %v821
  %v826 = vand.u32 2147483647, %v771
  %vm827 = vcmp.eq.f32.partialorder %v826, 8.507059e+37
  %v828 = vand.u32 %v771, 2147483648
  %v829 = vor.u32 1.1754944e-38, %v828
  %v830 = vsel %vm827, %v829, %v825
  %v831 = vmul.f32 1.0, %v830
  %v832 = vrcp.pop %v772
  %v833 = vmul.f32 %v772, %v832
  %v834 = vsub.f32 1.0, %v833
  %v835 = vmul.f32 %v832, %v834
  %v836 = vadd.f32 %v832, %v835
  %vm837 = vweird.f32 %v772
  %vm838 = vweird.f32 %v832
  %vm839 = vmor %vm837, %vm838
  %v840 = vsel %vm839, %v832, %v836
  %v841 = vand.u32 2147483647, %v772
  %vm842 = vcmp.eq.f32.partialorder %v841, 8.507059e+37
  %v843 = vand.u32 %v772, 2147483648
  %v844 = vor.u32 1.1754944e-38, %v843
  %v845 = vsel %vm842, %v844, %v840
  %v846 = vmul.f32 1.0, %v845
  %v847 = vrcp.pop %v773
  %v848 = vmul.f32 %v773, %v847
  %v849 = vsub.f32 1.0, %v848
  %v850 = vmul.f32 %v847, %v849
  %v851 = vadd.f32 %v847, %v850
  %vm852 = vweird.f32 %v773
  %vm853 = vweird.f32 %v847
  %vm854 = vmor %vm852, %vm853
  %v855 = vsel %vm854, %v847, %v851
  %v856 = vand.u32 2147483647, %v773
  %vm857 = vcmp.eq.f32.partialorder %v856, 8.507059e+37
  %v858 = vand.u32 %v773, 2147483648
  %v859 = vor.u32 1.1754944e-38, %v858
  %v860 = vsel %vm857, %v859, %v855
  %v861 = vmul.f32 1.0, %v860
  %v862 = vrcp.pop %v774
  %v863 = vmul.f32 %v774, %v862
  %v864 = vsub.f32 1.0, %v863
  %v865 = vmul.f32 %v862, %v864
  %v866 = vadd.f32 %v862, %v865
  %vm867 = vweird.f32 %v774
  %vm868 = vweird.f32 %v862
  %vm869 = vmor %vm867, %vm868
  %v870 = vsel %vm869, %v862, %v866
  %v871 = vand.u32 2147483647, %v774
  %vm872 = vcmp.eq.f32.partialorder %v871, 8.507059e+37
  %v873 = vand.u32 %v774, 2147483648
  %v874 = vor.u32 1.1754944e-38, %v873
  %v875 = vsel %vm872, %v874, %v870
  %v876 = vmul.f32 1.0, %v875
  %v877 = vrcp.pop %v775
  %v878 = vmul.f32 %v775, %v877
  %v879 = vsub.f32 1.0, %v878
  %v880 = vmul.f32 %v877, %v879
  %v881 = vadd.f32 %v877, %v880
  %vm882 = vweird.f32 %v775
  %vm883 = vweird.f32 %v877
  %vm884 = vmor %vm882, %vm883
  %v885 = vsel %vm884, %v877, %v881
  %v886 = vand.u32 2147483647, %v775
  %vm887 = vcmp.eq.f32.partialorder %v886, 8.507059e+37
  %v888 = vand.u32 %v775, 2147483648
  %v889 = vor.u32 1.1754944e-38, %v888
  %v890 = vsel %vm887, %v889, %v885
  %v891 = vmul.f32 1.0, %v890
  %v892 = vrcp.pop %v776
  %v893 = vmul.f32 %v776, %v892
  %v894 = vsub.f32 1.0, %v893
  %v895 = vmul.f32 %v892, %v894
  %v896 = vadd.f32 %v892, %v895
  %vm897 = vweird.f32 %v776
  %vm898 = vweird.f32 %v892
  %vm899 = vmor %vm897, %vm898
  %v900 = vsel %vm899, %v892, %v896
  %v901 = vand.u32 2147483647, %v776
  %vm902 = vcmp.eq.f32.partialorder %v901, 8.507059e+37
  %v903 = vand.u32 %v776, 2147483648
  %v904 = vor.u32 1.1754944e-38, %v903
  %v905 = vsel %vm902, %v904, %v900
  %v906 = vmul.f32 1.0, %v905
  %v907 = vrcp.pop %v777
  %v908 = vmul.f32 %v777, %v907
  %v909 = vsub.f32 1.0, %v908
  %v910 = vmul.f32 %v907, %v909
  %v911 = vadd.f32 %v907, %v910
  %vm912 = vweird.f32 %v777
  %vm913 = vweird.f32 %v907
  %vm914 = vmor %vm912, %vm913
  %v915 = vsel %vm914, %v907, %v911
  %v916 = vand.u32 2147483647, %v777
  %vm917 = vcmp.eq.f32.partialorder %v916, 8.507059e+37
  %v918 = vand.u32 %v777, 2147483648
  %v919 = vor.u32 1.1754944e-38, %v918
  %v920 = vsel %vm917, %v919, %v915
  %v921 = vmul.f32 1.0, %v920
  %v922 = vrcp.pop %v778
  %v923 = vmul.f32 %v778, %v922
  %v924 = vsub.f32 1.0, %v923
  %v925 = vmul.f32 %v922, %v924
  %v926 = vadd.f32 %v922, %v925
  %vm927 = vweird.f32 %v778
  %vm928 = vweird.f32 %v922
  %vm929 = vmor %vm927, %vm928
  %v930 = vsel %vm929, %v922, %v926
  %v931 = vand.u32 2147483647, %v778
  %vm932 = vcmp.eq.f32.partialorder %v931, 8.507059e+37
  %v933 = vand.u32 %v778, 2147483648
  %v934 = vor.u32 1.1754944e-38, %v933
  %v935 = vsel %vm932, %v934, %v930
  %v936 = vmul.f32 1.0, %v935
  %v937 = vrcp.pop %v779
  %v938 = vmul.f32 %v779, %v937
  %v939 = vsub.f32 1.0, %v938
  %v940 = vmul.f32 %v937, %v939
  %v941 = vadd.f32 %v937, %v940
  %vm942 = vweird.f32 %v779
  %vm943 = vweird.f32 %v937
  %vm944 = vmor %vm942, %vm943
  %v945 = vsel %vm944, %v937, %v941
  %v946 = vand.u32 2147483647, %v779
  %vm947 = vcmp.eq.f32.partialorder %v946, 8.507059e+37
  %v948 = vand.u32 %v779, 2147483648
  %v949 = vor.u32 1.1754944e-38, %v948
  %v950 = vsel %vm947, %v949, %v945
  %v951 = vmul.f32 1.0, %v950
  %v952 = vrcp.pop %v780
  %v953 = vmul.f32 %v780, %v952
  %v954 = vsub.f32 1.0, %v953
  %v955 = vmul.f32 %v952, %v954
  %v956 = vadd.f32 %v952, %v955
  %vm957 = vweird.f32 %v780
  %vm958 = vweird.f32 %v952
  %vm959 = vmor %vm957, %vm958
  %v960 = vsel %vm959, %v952, %v956
  %v961 = vand.u32 2147483647, %v780
  %vm962 = vcmp.eq.f32.partialorder %v961, 8.507059e+37
  %v963 = vand.u32 %v780, 2147483648
  %v964 = vor.u32 1.1754944e-38, %v963
  %v965 = vsel %vm962, %v964, %v960
  %v966 = vmul.f32 1.0, %v965
  %v967 = vrcp.pop %v781
  %v968 = vmul.f32 %v781, %v967
  %v969 = vsub.f32 1.0, %v968
  %v970 = vmul.f32 %v967, %v969
  %v971 = vadd.f32 %v967, %v970
  %vm972 = vweird.f32 %v781
  %vm973 = vweird.f32 %v967
  %vm974 = vmor %vm972, %vm973
  %v975 = vsel %vm974, %v967, %v971
  %v976 = vand.u32 2147483647, %v781
  %vm977 = vcmp.eq.f32.partialorder %v976, 8.507059e+37
  %v978 = vand.u32 %v781, 2147483648
  %v979 = vor.u32 1.1754944e-38, %v978
  %v980 = vsel %vm977, %v979, %v975
  %v981 = vmul.f32 1.0, %v980
  %v982 = vrcp.pop %v782
  %v983 = vmul.f32 %v782, %v982
  %v984 = vsub.f32 1.0, %v983
  %v985 = vmul.f32 %v982, %v984
  %v986 = vadd.f32 %v982, %v985
  %vm987 = vweird.f32 %v782
  %vm988 = vweird.f32 %v982
  %vm989 = vmor %vm987, %vm988
  %v990 = vsel %vm989, %v982, %v986
  %v991 = vand.u32 2147483647, %v782
  %vm992 = vcmp.eq.f32.partialorder %v991, 8.507059e+37
  %v993 = vand.u32 %v782, 2147483648
  %v994 = vor.u32 1.1754944e-38, %v993
  %v995 = vsel %vm992, %v994, %v990
  %v996 = vmul.f32 1.0, %v995
  %v997 = vrcp.pop %v783
  %v998 = vmul.f32 %v783, %v997
  %v999 = vsub.f32 1.0, %v998
  %v1000 = vmul.f32 %v997, %v999
  %v1001 = vadd.f32 %v997, %v1000
  %vm1002 = vweird.f32 %v783
  %vm1003 = vweird.f32 %v997
  %vm1004 = vmor %vm1002, %vm1003
  %v1005 = vsel %vm1004, %v997, %v1001
  %v1006 = vand.u32 2147483647, %v783
  %vm1007 = vcmp.eq.f32.partialorder %v1006, 8.507059e+37
  %v1008 = vand.u32 %v783, 2147483648
  %v1009 = vor.u32 1.1754944e-38, %v1008
  %v1010 = vsel %vm1007, %v1009, %v1005
  %v1011 = vmul.f32 1.0, %v1010
  %v1012 = vrcp.pop %v784
  %v1013 = vmul.f32 %v784, %v1012
  %v1014 = vsub.f32 1.0, %v1013
  %v1015 = vmul.f32 %v1012, %v1014
  %v1016 = vadd.f32 %v1012, %v1015
  %vm1017 = vweird.f32 %v784
  %vm1018 = vweird.f32 %v1012
  %vm1019 = vmor %vm1017, %vm1018
  %v1020 = vsel %vm1019, %v1012, %v1016
  %v1021 = vand.u32 2147483647, %v784
  %vm1022 = vcmp.eq.f32.partialorder %v1021, 8.507059e+37
  %v1023 = vand.u32 %v784, 2147483648
  %v1024 = vor.u32 1.1754944e-38, %v1023
  %v1025 = vsel %vm1022, %v1024, %v1020
  %v1026 = vmul.f32 1.0, %v1025
  %v1027 = vrcp.pop %v785
  %v1028 = vmul.f32 %v785, %v1027
  %v1029 = vsub.f32 1.0, %v1028
  %v1030 = vmul.f32 %v1027, %v1029
  %v1031 = vadd.f32 %v1027, %v1030
  %vm1032 = vweird.f32 %v785
  %vm1033 = vweird.f32 %v1027
  %vm1034 = vmor %vm1032, %vm1033
  %v1035 = vsel %vm1034, %v1027, %v1031
  %v1036 = vand.u32 2147483647, %v785
  %vm1037 = vcmp.eq.f32.partialorder %v1036, 8.507059e+37
  %v1038 = vand.u32 %v785, 2147483648
  %v1039 = vor.u32 1.1754944e-38, %v1038
  %v1040 = vsel %vm1037, %v1039, %v1035
  %v1041 = vmul.f32 1.0, %v1040
  %v1042 = vrcp.pop %v786
  %v1043 = vmul.f32 %v786, %v1042
  %v1044 = vsub.f32 1.0, %v1043
  %v1045 = vmul.f32 %v1042, %v1044
  %v1046 = vadd.f32 %v1042, %v1045
  %vm1047 = vweird.f32 %v786
  %vm1048 = vweird.f32 %v1042
  %vm1049 = vmor %vm1047, %vm1048
  %v1050 = vsel %vm1049, %v1042, %v1046
  %v1051 = vand.u32 2147483647, %v786
  %vm1052 = vcmp.eq.f32.partialorder %v1051, 8.507059e+37
  %v1053 = vand.u32 %v786, 2147483648
  %v1054 = vor.u32 1.1754944e-38, %v1053
  %v1055 = vsel %vm1052, %v1054, %v1050
  %v1056 = vmul.f32 1.0, %v1055
  %v1057 = vrcp.pop %v787
  %v1058 = vmul.f32 %v787, %v1057
  %v1059 = vsub.f32 1.0, %v1058
  %v1060 = vmul.f32 %v1057, %v1059
  %v1061 = vadd.f32 %v1057, %v1060
  %vm1062 = vweird.f32 %v787
  %vm1063 = vweird.f32 %v1057
  %vm1064 = vmor %vm1062, %vm1063
  %v1065 = vsel %vm1064, %v1057, %v1061
  %v1066 = vand.u32 2147483647, %v787
  %vm1067 = vcmp.eq.f32.partialorder %v1066, 8.507059e+37
  %v1068 = vand.u32 %v787, 2147483648
  %v1069 = vor.u32 1.1754944e-38, %v1068
  %v1070 = vsel %vm1067, %v1069, %v1065
  %v1071 = vmul.f32 1.0, %v1070
  %v1072 = vrcp.pop %v788
  %v1073 = vmul.f32 %v788, %v1072
  %v1074 = vsub.f32 1.0, %v1073
  %v1075 = vmul.f32 %v1072, %v1074
  %v1076 = vadd.f32 %v1072, %v1075
  %vm1077 = vweird.f32 %v788
  %vm1078 = vweird.f32 %v1072
  %vm1079 = vmor %vm1077, %vm1078
  %v1080 = vsel %vm1079, %v1072, %v1076
  %v1081 = vand.u32 2147483647, %v788
  %vm1082 = vcmp.eq.f32.partialorder %v1081, 8.507059e+37
  %v1083 = vand.u32 %v788, 2147483648
  %v1084 = vor.u32 1.1754944e-38, %v1083
  %v1085 = vsel %vm1082, %v1084, %v1080
  %v1086 = vmul.f32 1.0, %v1085
  %v1087 = vrcp.pop %v789
  %v1088 = vmul.f32 %v789, %v1087
  %v1089 = vsub.f32 1.0, %v1088
  %v1090 = vmul.f32 %v1087, %v1089
  %v1091 = vadd.f32 %v1087, %v1090
  %vm1092 = vweird.f32 %v789
  %vm1093 = vweird.f32 %v1087
  %vm1094 = vmor %vm1092, %vm1093
  %v1095 = vsel %vm1094, %v1087, %v1091
  %v1096 = vand.u32 2147483647, %v789
  %vm1097 = vcmp.eq.f32.partialorder %v1096, 8.507059e+37
  %v1098 = vand.u32 %v789, 2147483648
  %v1099 = vor.u32 1.1754944e-38, %v1098
  %v1100 = vsel %vm1097, %v1099, %v1095
  %v1101 = vmul.f32 1.0, %v1100
  %v1102 = vrcp.pop %v790
  %v1103 = vmul.f32 %v790, %v1102
  %v1104 = vsub.f32 1.0, %v1103
  %v1105 = vmul.f32 %v1102, %v1104
  %v1106 = vadd.f32 %v1102, %v1105
  %vm1107 = vweird.f32 %v790
  %vm1108 = vweird.f32 %v1102
  %vm1109 = vmor %vm1107, %vm1108
  %v1110 = vsel %vm1109, %v1102, %v1106
  %v1111 = vand.u32 2147483647, %v790
  %vm1112 = vcmp.eq.f32.partialorder %v1111, 8.507059e+37
  %v1113 = vand.u32 %v790, 2147483648
  %v1114 = vor.u32 1.1754944e-38, %v1113
  %v1115 = vsel %vm1112, %v1114, %v1110
  %v1116 = vmul.f32 1.0, %v1115
  %v1117 = vrcp.pop %v791
  %v1118 = vmul.f32 %v791, %v1117
  %v1119 = vsub.f32 1.0, %v1118
  %v1120 = vmul.f32 %v1117, %v1119
  %v1121 = vadd.f32 %v1117, %v1120
  %vm1122 = vweird.f32 %v791
  %vm1123 = vweird.f32 %v1117
  %vm1124 = vmor %vm1122, %vm1123
  %v1125 = vsel %vm1124, %v1117, %v1121
  %v1126 = vand.u32 2147483647, %v791
  %vm1127 = vcmp.eq.f32.partialorder %v1126, 8.507059e+37
  %v1128 = vand.u32 %v791, 2147483648
  %v1129 = vor.u32 1.1754944e-38, %v1128
  %v1130 = vsel %vm1127, %v1129, %v1125
  %v1131 = vmul.f32 1.0, %v1130
  %v1132 = vrcp.pop %v792
  %v1133 = vmul.f32 %v792, %v1132
  %v1134 = vsub.f32 1.0, %v1133
  %v1135 = vmul.f32 %v1132, %v1134
  %v1136 = vadd.f32 %v1132, %v1135
  %vm1137 = vweird.f32 %v792
  %vm1138 = vweird.f32 %v1132
  %vm1139 = vmor %vm1137, %vm1138
  %v1140 = vsel %vm1139, %v1132, %v1136
  %v1141 = vand.u32 2147483647, %v792
  %vm1142 = vcmp.eq.f32.partialorder %v1141, 8.507059e+37
  %v1143 = vand.u32 %v792, 2147483648
  %v1144 = vor.u32 1.1754944e-38, %v1143
  %v1145 = vsel %vm1142, %v1144, %v1140
  %v1146 = vmul.f32 1.0, %v1145
  %v1147 = vrcp.pop %v793
  %v1148 = vmul.f32 %v793, %v1147
  %v1149 = vsub.f32 1.0, %v1148
  %v1150 = vmul.f32 %v1147, %v1149
  %v1151 = vadd.f32 %v1147, %v1150
  %vm1152 = vweird.f32 %v793
  %vm1153 = vweird.f32 %v1147
  %vm1154 = vmor %vm1152, %vm1153
  %v1155 = vsel %vm1154, %v1147, %v1151
  %v1156 = vand.u32 2147483647, %v793
  %vm1157 = vcmp.eq.f32.partialorder %v1156, 8.507059e+37
  %v1158 = vand.u32 %v793, 2147483648
  %v1159 = vor.u32 1.1754944e-38, %v1158
  %v1160 = vsel %vm1157, %v1159, %v1155
  %v1161 = vmul.f32 1.0, %v1160
  %v1162 = vrcp.pop %v794
  %v1163 = vmul.f32 %v794, %v1162
  %v1164 = vsub.f32 1.0, %v1163
  %v1165 = vmul.f32 %v1162, %v1164
  %v1166 = vadd.f32 %v1162, %v1165
  %vm1167 = vweird.f32 %v794
  %vm1168 = vweird.f32 %v1162
  %vm1169 = vmor %vm1167, %vm1168
  %v1170 = vsel %vm1169, %v1162, %v1166
  %v1171 = vand.u32 2147483647, %v794
  %vm1172 = vcmp.eq.f32.partialorder %v1171, 8.507059e+37
  %v1173 = vand.u32 %v794, 2147483648
  %v1174 = vor.u32 1.1754944e-38, %v1173
  %v1175 = vsel %vm1172, %v1174, %v1170
  %v1176 = vmul.f32 1.0, %v1175
  %v1177 = vrcp.pop %v795
  %v1178 = vmul.f32 %v795, %v1177
  %v1179 = vsub.f32 1.0, %v1178
  %v1180 = vmul.f32 %v1177, %v1179
  %v1181 = vadd.f32 %v1177, %v1180
  %vm1182 = vweird.f32 %v795
  %vm1183 = vweird.f32 %v1177
  %vm1184 = vmor %vm1182, %vm1183
  %v1185 = vsel %vm1184, %v1177, %v1181
  %v1186 = vand.u32 2147483647, %v795
  %vm1187 = vcmp.eq.f32.partialorder %v1186, 8.507059e+37
  %v1188 = vand.u32 %v795, 2147483648
  %v1189 = vor.u32 1.1754944e-38, %v1188
  %v1190 = vsel %vm1187, %v1189, %v1185
  %v1191 = vmul.f32 1.0, %v1190
  %v1192 = vrcp.pop %v796
  %v1193 = vmul.f32 %v796, %v1192
  %v1194 = vsub.f32 1.0, %v1193
  %v1195 = vmul.f32 %v1192, %v1194
  %v1196 = vadd.f32 %v1192, %v1195
  %vm1197 = vweird.f32 %v796
  %vm1198 = vweird.f32 %v1192
  %vm1199 = vmor %vm1197, %vm1198
  %v1200 = vsel %vm1199, %v1192, %v1196
  %v1201 = vand.u32 2147483647, %v796
  %vm1202 = vcmp.eq.f32.partialorder %v1201, 8.507059e+37
  %v1203 = vand.u32 %v796, 2147483648
  %v1204 = vor.u32 1.1754944e-38, %v1203
  %v1205 = vsel %vm1202, %v1204, %v1200
  %v1206 = vmul.f32 1.0, %v1205
  %v1207 = vrcp.pop %v797
  %v1208 = vmul.f32 %v797, %v1207
  %v1209 = vsub.f32 1.0, %v1208
  %v1210 = vmul.f32 %v1207, %v1209
  %v1211 = vadd.f32 %v1207, %v1210
  %vm1212 = vweird.f32 %v797
  %vm1213 = vweird.f32 %v1207
  %vm1214 = vmor %vm1212, %vm1213
  %v1215 = vsel %vm1214, %v1207, %v1211
  %v1216 = vand.u32 2147483647, %v797
  %vm1217 = vcmp.eq.f32.partialorder %v1216, 8.507059e+37
  %v1218 = vand.u32 %v797, 2147483648
  %v1219 = vor.u32 1.1754944e-38, %v1218
  %v1220 = vsel %vm1217, %v1219, %v1215
  %v1221 = vmul.f32 1.0, %v1220
  %v1222 = vrcp.pop %v798
  %v1223 = vmul.f32 %v798, %v1222
  %v1224 = vsub.f32 1.0, %v1223
  %v1225 = vmul.f32 %v1222, %v1224
  %v1226 = vadd.f32 %v1222, %v1225
  %vm1227 = vweird.f32 %v798
  %vm1228 = vweird.f32 %v1222
  %vm1229 = vmor %vm1227, %vm1228
  %v1230 = vsel %vm1229, %v1222, %v1226
  %v1231 = vand.u32 2147483647, %v798
  %vm1232 = vcmp.eq.f32.partialorder %v1231, 8.507059e+37
  %v1233 = vand.u32 %v798, 2147483648
  %v1234 = vor.u32 1.1754944e-38, %v1233
  %v1235 = vsel %vm1232, %v1234, %v1230
  %v1236 = vmul.f32 1.0, %v1235
  %v1237 = vrcp.pop %v799
  %v1238 = vmul.f32 %v799, %v1237
  %v1239 = vsub.f32 1.0, %v1238
  %v1240 = vmul.f32 %v1237, %v1239
  %v1241 = vadd.f32 %v1237, %v1240
  %vm1242 = vweird.f32 %v799
  %vm1243 = vweird.f32 %v1237
  %vm1244 = vmor %vm1242, %vm1243
  %v1245 = vsel %vm1244, %v1237, %v1241
  %v1246 = vand.u32 2147483647, %v799
  %vm1247 = vcmp.eq.f32.partialorder %v1246, 8.507059e+37
  %v1248 = vand.u32 %v799, 2147483648
  %v1249 = vor.u32 1.1754944e-38, %v1248
  %v1250 = vsel %vm1247, %v1249, %v1245
  %v1251 = vmul.f32 1.0, %v1250
  %v1252 = vrcp.pop %v800
  %v1253 = vmul.f32 %v800, %v1252
  %v1254 = vsub.f32 1.0, %v1253
  %v1255 = vmul.f32 %v1252, %v1254
  %v1256 = vadd.f32 %v1252, %v1255
  %vm1257 = vweird.f32 %v800
  %vm1258 = vweird.f32 %v1252
  %vm1259 = vmor %vm1257, %vm1258
  %v1260 = vsel %vm1259, %v1252, %v1256
  %v1261 = vand.u32 2147483647, %v800
  %vm1262 = vcmp.eq.f32.partialorder %v1261, 8.507059e+37
  %v1263 = vand.u32 %v800, 2147483648
  %v1264 = vor.u32 1.1754944e-38, %v1263
  %v1265 = vsel %vm1262, %v1264, %v1260
  %v1266 = vmul.f32 1.0, %v1265
  %v1267 = vrcp.pop %v801
  %v1268 = vmul.f32 %v801, %v1267
  %v1269 = vsub.f32 1.0, %v1268
  %v1270 = vmul.f32 %v1267, %v1269
  %v1271 = vadd.f32 %v1267, %v1270
  %vm1272 = vweird.f32 %v801
  %vm1273 = vweird.f32 %v1267
  %vm1274 = vmor %vm1272, %vm1273
  %v1275 = vsel %vm1274, %v1267, %v1271
  %v1276 = vand.u32 2147483647, %v801
  %vm1277 = vcmp.eq.f32.partialorder %v1276, 8.507059e+37
  %v1278 = vand.u32 %v801, 2147483648
  %v1279 = vor.u32 1.1754944e-38, %v1278
  %v1280 = vsel %vm1277, %v1279, %v1275
  %v1281 = vmul.f32 1.0, %v1280
  %v1282 = vld [vmem:[%s3] sm:$0xff]
  %v1283 = vld [vmem:[%s3 + $0x8] sm:$0xff]
  %v1284 = vld [vmem:[%s3 + $0x10] sm:$0xff]
  %v1285 = vld [vmem:[%s3 + $0x18] sm:$0xff]
  %v1286 = vld [vmem:[%s3 + $0x20] sm:$0xff]
  %v1287 = vld [vmem:[%s3 + $0x28] sm:$0xff]
  %v1288 = vld [vmem:[%s3 + $0x30] sm:$0xff]
  %v1289 = vld [vmem:[%s3 + $0x38] sm:$0xff]
  %v1290 = vld [vmem:[%s3 + $0x40] sm:$0xff]
  %v1291 = vld [vmem:[%s3 + $0x48] sm:$0xff]
  %v1292 = vld [vmem:[%s3 + $0x50] sm:$0xff]
  %v1293 = vld [vmem:[%s3 + $0x58] sm:$0xff]
  %v1294 = vld [vmem:[%s3 + $0x60] sm:$0xff]
  %v1295 = vld [vmem:[%s3 + $0x68] sm:$0xff]
  %v1296 = vld [vmem:[%s3 + $0x70] sm:$0xff]
  %v1297 = vld [vmem:[%s3 + $0x78] sm:$0xff]
  %v1298 = vld [vmem:[%s4] sm:$0x1]
  %v1300 = vperm.slane %v1298, 0
  %1302 = vmatpush.msra.mxu0 %v1297
  %1303 = vmatpush.msra.mxu0 %v1296
  %1304 = vmatpush.msra.mxu0 %v1295
  %1305 = vmatpush.msra.mxu0 %v1294
  %1306 = vmatpush.msra.mxu0 %v1293
  %1307 = vmatpush.msra.mxu0 %v1292
  %1308 = vmatpush.msra.mxu0 %v1291
  %1309 = vmatpush.msra.mxu0 %v1290
  %1310 = vmatpush.msra.mxu0 %v1289
  %1311 = vmatpush.msra.mxu0 %v1288
  %1312 = vmatpush.msra.mxu0 %v1287
  %1313 = vmatpush.msra.mxu0 %v1286
  %1314 = vmatpush.msra.mxu0 %v1285
  %1315 = vmatpush.msra.mxu0 %v1284
  %1316 = vmatpush.msra.mxu0 %v1283
  %1317 = vmatpush.msra.mxu0 %v1282
  %1318 = vmatmul.f32.gmra.mxu0 %v816
  %v1319 = vpop.f32.mrf.mxu0
  %v1320 = vadd.f32 %v1300, %v1319
  %1321 = vmatmul.f32.gmra.mxu0 %v831
  %v1322 = vpop.f32.mrf.mxu0
  %v1323 = vadd.f32 %v1300, %v1322
  %1324 = vmatmul.f32.gmra.mxu0 %v846
  %v1325 = vpop.f32.mrf.mxu0
  %v1326 = vadd.f32 %v1300, %v1325
  %1327 = vmatmul.f32.gmra.mxu0 %v861
  %v1328 = vpop.f32.mrf.mxu0
  %v1329 = vadd.f32 %v1300, %v1328
  %1330 = vmatmul.f32.gmra.mxu0 %v876
  %v1331 = vpop.f32.mrf.mxu0
  %v1332 = vadd.f32 %v1300, %v1331
  %1333 = vmatmul.f32.gmra.mxu0 %v891
  %v1334 = vpop.f32.mrf.mxu0
  %v1335 = vadd.f32 %v1300, %v1334
  %1336 = vmatmul.f32.gmra.mxu0 %v906
  %v1337 = vpop.f32.mrf.mxu0
  %v1338 = vadd.f32 %v1300, %v1337
  %1339 = vmatmul.f32.gmra.mxu0 %v921
  %v1340 = vpop.f32.mrf.mxu0
  %v1341 = vadd.f32 %v1300, %v1340
  %1342 = vmatmul.f32.gmra.mxu0 %v936
  %v1343 = vpop.f32.mrf.mxu0
  %v1344 = vadd.f32 %v1300, %v1343
  %1345 = vmatmul.f32.gmra.mxu0 %v951
  %v1346 = vpop.f32.mrf.mxu0
  %v1347 = vadd.f32 %v1300, %v1346
  %1348 = vmatmul.f32.gmra.mxu0 %v966
  %v1349 = vpop.f32.mrf.mxu0
  %v1350 = vadd.f32 %v1300, %v1349
  %1351 = vmatmul.f32.gmra.mxu0 %v981
  %v1352 = vpop.f32.mrf.mxu0
  %v1353 = vadd.f32 %v1300, %v1352
  %1354 = vmatmul.f32.gmra.mxu0 %v996
  %v1355 = vpop.f32.mrf.mxu0
  %v1356 = vadd.f32 %v1300, %v1355
  %1357 = vmatmul.f32.gmra.mxu0 %v1011
  %v1358 = vpop.f32.mrf.mxu0
  %v1359 = vadd.f32 %v1300, %v1358
  %1360 = vmatmul.f32.gmra.mxu0 %v1026
  %v1361 = vpop.f32.mrf.mxu0
  %v1362 = vadd.f32 %v1300, %v1361
  %1363 = vmatmul.f32.gmra.mxu0 %v1041
  %v1364 = vpop.f32.mrf.mxu0
  %v1365 = vadd.f32 %v1300, %v1364
  %1366 = vmatmul.f32.gmra.mxu0 %v1056
  %v1367 = vpop.f32.mrf.mxu0
  %v1368 = vadd.f32 %v1300, %v1367
  %1369 = vmatmul.f32.gmra.mxu0 %v1071
  %v1370 = vpop.f32.mrf.mxu0
  %v1371 = vadd.f32 %v1300, %v1370
  %1372 = vmatmul.f32.gmra.mxu0 %v1086
  %v1373 = vpop.f32.mrf.mxu0
  %v1374 = vadd.f32 %v1300, %v1373
  %1375 = vmatmul.f32.gmra.mxu0 %v1101
  %v1376 = vpop.f32.mrf.mxu0
  %v1377 = vadd.f32 %v1300, %v1376
  %1378 = vmatmul.f32.gmra.mxu0 %v1116
  %v1379 = vpop.f32.mrf.mxu0
  %v1380 = vadd.f32 %v1300, %v1379
  %1381 = vmatmul.f32.gmra.mxu0 %v1131
  %v1382 = vpop.f32.mrf.mxu0
  %v1383 = vadd.f32 %v1300, %v1382
  %1384 = vmatmul.f32.gmra.mxu0 %v1146
  %v1385 = vpop.f32.mrf.mxu0
  %v1386 = vadd.f32 %v1300, %v1385
  %1387 = vmatmul.f32.gmra.mxu0 %v1161
  %v1388 = vpop.f32.mrf.mxu0
  %v1389 = vadd.f32 %v1300, %v1388
  %1390 = vmatmul.f32.gmra.mxu0 %v1176
  %v1391 = vpop.f32.mrf.mxu0
  %v1392 = vadd.f32 %v1300, %v1391
  %1393 = vmatmul.f32.gmra.mxu0 %v1191
  %v1394 = vpop.f32.mrf.mxu0
  %v1395 = vadd.f32 %v1300, %v1394
  %1396 = vmatmul.f32.gmra.mxu0 %v1206
  %v1397 = vpop.f32.mrf.mxu0
  %v1398 = vadd.f32 %v1300, %v1397
  %1399 = vmatmul.f32.gmra.mxu0 %v1221
  %v1400 = vpop.f32.mrf.mxu0
  %v1401 = vadd.f32 %v1300, %v1400
  %1402 = vmatmul.f32.gmra.mxu0 %v1236
  %v1403 = vpop.f32.mrf.mxu0
  %v1404 = vadd.f32 %v1300, %v1403
  %1405 = vmatmul.f32.gmra.mxu0 %v1251
  %v1406 = vpop.f32.mrf.mxu0
  %v1407 = vadd.f32 %v1300, %v1406
  %1408 = vmatmul.f32.gmra.mxu0 %v1266
  %v1409 = vpop.f32.mrf.mxu0
  %v1410 = vadd.f32 %v1300, %v1409
  %1411 = vmatmul.f32.gmra.mxu0 %v1281
  %v1412 = vpop.f32.mrf.mxu0
  %v1413 = vadd.f32 %v1300, %v1412
  %1414 = vdwg.mxu0
  %v1415 = vxor.u32 %v1320, 2147483648
  %v1416 = vxor.u32 %v1323, 2147483648
  %v1417 = vxor.u32 %v1326, 2147483648
  %v1418 = vxor.u32 %v1329, 2147483648
  %v1419 = vxor.u32 %v1332, 2147483648
  %v1420 = vxor.u32 %v1335, 2147483648
  %v1421 = vxor.u32 %v1338, 2147483648
  %v1422 = vxor.u32 %v1341, 2147483648
  %v1423 = vxor.u32 %v1344, 2147483648
  %v1424 = vxor.u32 %v1347, 2147483648
  %v1425 = vxor.u32 %v1350, 2147483648
  %v1426 = vxor.u32 %v1353, 2147483648
  %v1427 = vxor.u32 %v1356, 2147483648
  %v1428 = vxor.u32 %v1359, 2147483648
  %v1429 = vxor.u32 %v1362, 2147483648
  %v1430 = vxor.u32 %v1365, 2147483648
  %v1431 = vxor.u32 %v1368, 2147483648
  %v1432 = vxor.u32 %v1371, 2147483648
  %v1433 = vxor.u32 %v1374, 2147483648
  %v1434 = vxor.u32 %v1377, 2147483648
  %v1435 = vxor.u32 %v1380, 2147483648
  %v1436 = vxor.u32 %v1383, 2147483648
  %v1437 = vxor.u32 %v1386, 2147483648
  %v1438 = vxor.u32 %v1389, 2147483648
  %v1439 = vxor.u32 %v1392, 2147483648
  %v1440 = vxor.u32 %v1395, 2147483648
  %v1441 = vxor.u32 %v1398, 2147483648
  %v1442 = vxor.u32 %v1401, 2147483648
  %v1443 = vxor.u32 %v1404, 2147483648
  %v1444 = vxor.u32 %v1407, 2147483648
  %v1445 = vxor.u32 %v1410, 2147483648
  %v1446 = vxor.u32 %v1413, 2147483648
  %v1447 = vmul.f32 %v1415, 1.442695
  %v1448 = vpow.pop %v1447
  %v1449 = vmul.f32 %v1416, 1.442695
  %v1450 = vpow.pop %v1449
  %v1451 = vmul.f32 %v1417, 1.442695
  %v1452 = vpow.pop %v1451
  %v1453 = vmul.f32 %v1418, 1.442695
  %v1454 = vpow.pop %v1453
  %v1455 = vmul.f32 %v1419, 1.442695
  %v1456 = vpow.pop %v1455
  %v1457 = vmul.f32 %v1420, 1.442695
  %v1458 = vpow.pop %v1457
  %v1459 = vmul.f32 %v1421, 1.442695
  %v1460 = vpow.pop %v1459
  %v1461 = vmul.f32 %v1422, 1.442695
  %v1462 = vpow.pop %v1461
  %v1463 = vmul.f32 %v1423, 1.442695
  %v1464 = vpow.pop %v1463
  %v1465 = vmul.f32 %v1424, 1.442695
  %v1466 = vpow.pop %v1465
  %v1467 = vmul.f32 %v1425, 1.442695
  %v1468 = vpow.pop %v1467
  %v1469 = vmul.f32 %v1426, 1.442695
  %v1470 = vpow.pop %v1469
  %v1471 = vmul.f32 %v1427, 1.442695
  %v1472 = vpow.pop %v1471
  %v1473 = vmul.f32 %v1428, 1.442695
  %v1474 = vpow.pop %v1473
  %v1475 = vmul.f32 %v1429, 1.442695
  %v1476 = vpow.pop %v1475
  %v1477 = vmul.f32 %v1430, 1.442695
  %v1478 = vpow.pop %v1477
  %v1479 = vmul.f32 %v1431, 1.442695
  %v1480 = vpow.pop %v1479
  %v1481 = vmul.f32 %v1432, 1.442695
  %v1482 = vpow.pop %v1481
  %v1483 = vmul.f32 %v1433, 1.442695
  %v1484 = vpow.pop %v1483
  %v1485 = vmul.f32 %v1434, 1.442695
  %v1486 = vpow.pop %v1485
  %v1487 = vmul.f32 %v1435, 1.442695
  %v1488 = vpow.pop %v1487
  %v1489 = vmul.f32 %v1436, 1.442695
  %v1490 = vpow.pop %v1489
  %v1491 = vmul.f32 %v1437, 1.442695
  %v1492 = vpow.pop %v1491
  %v1493 = vmul.f32 %v1438, 1.442695
  %v1494 = vpow.pop %v1493
  %v1495 = vmul.f32 %v1439, 1.442695
  %v1496 = vpow.pop %v1495
  %v1497 = vmul.f32 %v1440, 1.442695
  %v1498 = vpow.pop %v1497
  %v1499 = vmul.f32 %v1441, 1.442695
  %v1500 = vpow.pop %v1499
  %v1501 = vmul.f32 %v1442, 1.442695
  %v1502 = vpow.pop %v1501
  %v1503 = vmul.f32 %v1443, 1.442695
  %v1504 = vpow.pop %v1503
  %v1505 = vmul.f32 %v1444, 1.442695
  %v1506 = vpow.pop %v1505
  %v1507 = vmul.f32 %v1445, 1.442695
  %v1508 = vpow.pop %v1507
  %v1509 = vmul.f32 %v1446, 1.442695
  %v1510 = vpow.pop %v1509
  %v1511 = vadd.f32 %v1448, 1.0
  %v1512 = vadd.f32 %v1450, 1.0
  %v1513 = vadd.f32 %v1452, 1.0
  %v1514 = vadd.f32 %v1454, 1.0
  %v1515 = vadd.f32 %v1456, 1.0
  %v1516 = vadd.f32 %v1458, 1.0
  %v1517 = vadd.f32 %v1460, 1.0
  %v1518 = vadd.f32 %v1462, 1.0
  %v1519 = vadd.f32 %v1464, 1.0
  %v1520 = vadd.f32 %v1466, 1.0
  %v1521 = vadd.f32 %v1468, 1.0
  %v1522 = vadd.f32 %v1470, 1.0
  %v1523 = vadd.f32 %v1472, 1.0
  %v1524 = vadd.f32 %v1474, 1.0
  %v1525 = vadd.f32 %v1476, 1.0
  %v1526 = vadd.f32 %v1478, 1.0
  %v1527 = vadd.f32 %v1480, 1.0
  %v1528 = vadd.f32 %v1482, 1.0
  %v1529 = vadd.f32 %v1484, 1.0
  %v1530 = vadd.f32 %v1486, 1.0
  %v1531 = vadd.f32 %v1488, 1.0
  %v1532 = vadd.f32 %v1490, 1.0
  %v1533 = vadd.f32 %v1492, 1.0
  %v1534 = vadd.f32 %v1494, 1.0
  %v1535 = vadd.f32 %v1496, 1.0
  %v1536 = vadd.f32 %v1498, 1.0
  %v1537 = vadd.f32 %v1500, 1.0
  %v1538 = vadd.f32 %v1502, 1.0
  %v1539 = vadd.f32 %v1504, 1.0
  %v1540 = vadd.f32 %v1506, 1.0
  %v1541 = vadd.f32 %v1508, 1.0
  %v1542 = vadd.f32 %v1510, 1.0
  %v1543 = vrcp.pop %v1511
  %v1544 = vmul.f32 %v1511, %v1543
  %v1545 = vsub.f32 1.0, %v1544
  %v1546 = vmul.f32 %v1543, %v1545
  %v1547 = vadd.f32 %v1543, %v1546
  %vm1548 = vweird.f32 %v1511
  %vm1549 = vweird.f32 %v1543
  %vm1550 = vmor %vm1548, %vm1549
  %v1551 = vsel %vm1550, %v1543, %v1547
  %v1552 = vand.u32 2147483647, %v1511
  %vm1553 = vcmp.eq.f32.partialorder %v1552, 8.507059e+37
  %v1554 = vand.u32 %v1511, 2147483648
  %v1555 = vor.u32 1.1754944e-38, %v1554
  %v1556 = vsel %vm1553, %v1555, %v1551
  %v1557 = vmul.f32 1.0, %v1556
  %v1558 = vrcp.pop %v1512
  %v1559 = vmul.f32 %v1512, %v1558
  %v1560 = vsub.f32 1.0, %v1559
  %v1561 = vmul.f32 %v1558, %v1560
  %v1562 = vadd.f32 %v1558, %v1561
  %vm1563 = vweird.f32 %v1512
  %vm1564 = vweird.f32 %v1558
  %vm1565 = vmor %vm1563, %vm1564
  %v1566 = vsel %vm1565, %v1558, %v1562
  %v1567 = vand.u32 2147483647, %v1512
  %vm1568 = vcmp.eq.f32.partialorder %v1567, 8.507059e+37
  %v1569 = vand.u32 %v1512, 2147483648
  %v1570 = vor.u32 1.1754944e-38, %v1569
  %v1571 = vsel %vm1568, %v1570, %v1566
  %v1572 = vmul.f32 1.0, %v1571
  %v1573 = vrcp.pop %v1513
  %v1574 = vmul.f32 %v1513, %v1573
  %v1575 = vsub.f32 1.0, %v1574
  %v1576 = vmul.f32 %v1573, %v1575
  %v1577 = vadd.f32 %v1573, %v1576
  %vm1578 = vweird.f32 %v1513
  %vm1579 = vweird.f32 %v1573
  %vm1580 = vmor %vm1578, %vm1579
  %v1581 = vsel %vm1580, %v1573, %v1577
  %v1582 = vand.u32 2147483647, %v1513
  %vm1583 = vcmp.eq.f32.partialorder %v1582, 8.507059e+37
  %v1584 = vand.u32 %v1513, 2147483648
  %v1585 = vor.u32 1.1754944e-38, %v1584
  %v1586 = vsel %vm1583, %v1585, %v1581
  %v1587 = vmul.f32 1.0, %v1586
  %v1588 = vrcp.pop %v1514
  %v1589 = vmul.f32 %v1514, %v1588
  %v1590 = vsub.f32 1.0, %v1589
  %v1591 = vmul.f32 %v1588, %v1590
  %v1592 = vadd.f32 %v1588, %v1591
  %vm1593 = vweird.f32 %v1514
  %vm1594 = vweird.f32 %v1588
  %vm1595 = vmor %vm1593, %vm1594
  %v1596 = vsel %vm1595, %v1588, %v1592
  %v1597 = vand.u32 2147483647, %v1514
  %vm1598 = vcmp.eq.f32.partialorder %v1597, 8.507059e+37
  %v1599 = vand.u32 %v1514, 2147483648
  %v1600 = vor.u32 1.1754944e-38, %v1599
  %v1601 = vsel %vm1598, %v1600, %v1596
  %v1602 = vmul.f32 1.0, %v1601
  %v1603 = vrcp.pop %v1515
  %v1604 = vmul.f32 %v1515, %v1603
  %v1605 = vsub.f32 1.0, %v1604
  %v1606 = vmul.f32 %v1603, %v1605
  %v1607 = vadd.f32 %v1603, %v1606
  %vm1608 = vweird.f32 %v1515
  %vm1609 = vweird.f32 %v1603
  %vm1610 = vmor %vm1608, %vm1609
  %v1611 = vsel %vm1610, %v1603, %v1607
  %v1612 = vand.u32 2147483647, %v1515
  %vm1613 = vcmp.eq.f32.partialorder %v1612, 8.507059e+37
  %v1614 = vand.u32 %v1515, 2147483648
  %v1615 = vor.u32 1.1754944e-38, %v1614
  %v1616 = vsel %vm1613, %v1615, %v1611
  %v1617 = vmul.f32 1.0, %v1616
  %v1618 = vrcp.pop %v1516
  %v1619 = vmul.f32 %v1516, %v1618
  %v1620 = vsub.f32 1.0, %v1619
  %v1621 = vmul.f32 %v1618, %v1620
  %v1622 = vadd.f32 %v1618, %v1621
  %vm1623 = vweird.f32 %v1516
  %vm1624 = vweird.f32 %v1618
  %vm1625 = vmor %vm1623, %vm1624
  %v1626 = vsel %vm1625, %v1618, %v1622
  %v1627 = vand.u32 2147483647, %v1516
  %vm1628 = vcmp.eq.f32.partialorder %v1627, 8.507059e+37
  %v1629 = vand.u32 %v1516, 2147483648
  %v1630 = vor.u32 1.1754944e-38, %v1629
  %v1631 = vsel %vm1628, %v1630, %v1626
  %v1632 = vmul.f32 1.0, %v1631
  %v1633 = vrcp.pop %v1517
  %v1634 = vmul.f32 %v1517, %v1633
  %v1635 = vsub.f32 1.0, %v1634
  %v1636 = vmul.f32 %v1633, %v1635
  %v1637 = vadd.f32 %v1633, %v1636
  %vm1638 = vweird.f32 %v1517
  %vm1639 = vweird.f32 %v1633
  %vm1640 = vmor %vm1638, %vm1639
  %v1641 = vsel %vm1640, %v1633, %v1637
  %v1642 = vand.u32 2147483647, %v1517
  %vm1643 = vcmp.eq.f32.partialorder %v1642, 8.507059e+37
  %v1644 = vand.u32 %v1517, 2147483648
  %v1645 = vor.u32 1.1754944e-38, %v1644
  %v1646 = vsel %vm1643, %v1645, %v1641
  %v1647 = vmul.f32 1.0, %v1646
  %v1648 = vrcp.pop %v1518
  %v1649 = vmul.f32 %v1518, %v1648
  %v1650 = vsub.f32 1.0, %v1649
  %v1651 = vmul.f32 %v1648, %v1650
  %v1652 = vadd.f32 %v1648, %v1651
  %vm1653 = vweird.f32 %v1518
  %vm1654 = vweird.f32 %v1648
  %vm1655 = vmor %vm1653, %vm1654
  %v1656 = vsel %vm1655, %v1648, %v1652
  %v1657 = vand.u32 2147483647, %v1518
  %vm1658 = vcmp.eq.f32.partialorder %v1657, 8.507059e+37
  %v1659 = vand.u32 %v1518, 2147483648
  %v1660 = vor.u32 1.1754944e-38, %v1659
  %v1661 = vsel %vm1658, %v1660, %v1656
  %v1662 = vmul.f32 1.0, %v1661
  %v1663 = vrcp.pop %v1519
  %v1664 = vmul.f32 %v1519, %v1663
  %v1665 = vsub.f32 1.0, %v1664
  %v1666 = vmul.f32 %v1663, %v1665
  %v1667 = vadd.f32 %v1663, %v1666
  %vm1668 = vweird.f32 %v1519
  %vm1669 = vweird.f32 %v1663
  %vm1670 = vmor %vm1668, %vm1669
  %v1671 = vsel %vm1670, %v1663, %v1667
  %v1672 = vand.u32 2147483647, %v1519
  %vm1673 = vcmp.eq.f32.partialorder %v1672, 8.507059e+37
  %v1674 = vand.u32 %v1519, 2147483648
  %v1675 = vor.u32 1.1754944e-38, %v1674
  %v1676 = vsel %vm1673, %v1675, %v1671
  %v1677 = vmul.f32 1.0, %v1676
  %v1678 = vrcp.pop %v1520
  %v1679 = vmul.f32 %v1520, %v1678
  %v1680 = vsub.f32 1.0, %v1679
  %v1681 = vmul.f32 %v1678, %v1680
  %v1682 = vadd.f32 %v1678, %v1681
  %vm1683 = vweird.f32 %v1520
  %vm1684 = vweird.f32 %v1678
  %vm1685 = vmor %vm1683, %vm1684
  %v1686 = vsel %vm1685, %v1678, %v1682
  %v1687 = vand.u32 2147483647, %v1520
  %vm1688 = vcmp.eq.f32.partialorder %v1687, 8.507059e+37
  %v1689 = vand.u32 %v1520, 2147483648
  %v1690 = vor.u32 1.1754944e-38, %v1689
  %v1691 = vsel %vm1688, %v1690, %v1686
  %v1692 = vmul.f32 1.0, %v1691
  %v1693 = vrcp.pop %v1521
  %v1694 = vmul.f32 %v1521, %v1693
  %v1695 = vsub.f32 1.0, %v1694
  %v1696 = vmul.f32 %v1693, %v1695
  %v1697 = vadd.f32 %v1693, %v1696
  %vm1698 = vweird.f32 %v1521
  %vm1699 = vweird.f32 %v1693
  %vm1700 = vmor %vm1698, %vm1699
  %v1701 = vsel %vm1700, %v1693, %v1697
  %v1702 = vand.u32 2147483647, %v1521
  %vm1703 = vcmp.eq.f32.partialorder %v1702, 8.507059e+37
  %v1704 = vand.u32 %v1521, 2147483648
  %v1705 = vor.u32 1.1754944e-38, %v1704
  %v1706 = vsel %vm1703, %v1705, %v1701
  %v1707 = vmul.f32 1.0, %v1706
  %v1708 = vrcp.pop %v1522
  %v1709 = vmul.f32 %v1522, %v1708
  %v1710 = vsub.f32 1.0, %v1709
  %v1711 = vmul.f32 %v1708, %v1710
  %v1712 = vadd.f32 %v1708, %v1711
  %vm1713 = vweird.f32 %v1522
  %vm1714 = vweird.f32 %v1708
  %vm1715 = vmor %vm1713, %vm1714
  %v1716 = vsel %vm1715, %v1708, %v1712
  %v1717 = vand.u32 2147483647, %v1522
  %vm1718 = vcmp.eq.f32.partialorder %v1717, 8.507059e+37
  %v1719 = vand.u32 %v1522, 2147483648
  %v1720 = vor.u32 1.1754944e-38, %v1719
  %v1721 = vsel %vm1718, %v1720, %v1716
  %v1722 = vmul.f32 1.0, %v1721
  %v1723 = vrcp.pop %v1523
  %v1724 = vmul.f32 %v1523, %v1723
  %v1725 = vsub.f32 1.0, %v1724
  %v1726 = vmul.f32 %v1723, %v1725
  %v1727 = vadd.f32 %v1723, %v1726
  %vm1728 = vweird.f32 %v1523
  %vm1729 = vweird.f32 %v1723
  %vm1730 = vmor %vm1728, %vm1729
  %v1731 = vsel %vm1730, %v1723, %v1727
  %v1732 = vand.u32 2147483647, %v1523
  %vm1733 = vcmp.eq.f32.partialorder %v1732, 8.507059e+37
  %v1734 = vand.u32 %v1523, 2147483648
  %v1735 = vor.u32 1.1754944e-38, %v1734
  %v1736 = vsel %vm1733, %v1735, %v1731
  %v1737 = vmul.f32 1.0, %v1736
  %v1738 = vrcp.pop %v1524
  %v1739 = vmul.f32 %v1524, %v1738
  %v1740 = vsub.f32 1.0, %v1739
  %v1741 = vmul.f32 %v1738, %v1740
  %v1742 = vadd.f32 %v1738, %v1741
  %vm1743 = vweird.f32 %v1524
  %vm1744 = vweird.f32 %v1738
  %vm1745 = vmor %vm1743, %vm1744
  %v1746 = vsel %vm1745, %v1738, %v1742
  %v1747 = vand.u32 2147483647, %v1524
  %vm1748 = vcmp.eq.f32.partialorder %v1747, 8.507059e+37
  %v1749 = vand.u32 %v1524, 2147483648
  %v1750 = vor.u32 1.1754944e-38, %v1749
  %v1751 = vsel %vm1748, %v1750, %v1746
  %v1752 = vmul.f32 1.0, %v1751
  %v1753 = vrcp.pop %v1525
  %v1754 = vmul.f32 %v1525, %v1753
  %v1755 = vsub.f32 1.0, %v1754
  %v1756 = vmul.f32 %v1753, %v1755
  %v1757 = vadd.f32 %v1753, %v1756
  %vm1758 = vweird.f32 %v1525
  %vm1759 = vweird.f32 %v1753
  %vm1760 = vmor %vm1758, %vm1759
  %v1761 = vsel %vm1760, %v1753, %v1757
  %v1762 = vand.u32 2147483647, %v1525
  %vm1763 = vcmp.eq.f32.partialorder %v1762, 8.507059e+37
  %v1764 = vand.u32 %v1525, 2147483648
  %v1765 = vor.u32 1.1754944e-38, %v1764
  %v1766 = vsel %vm1763, %v1765, %v1761
  %v1767 = vmul.f32 1.0, %v1766
  %v1768 = vrcp.pop %v1526
  %v1769 = vmul.f32 %v1526, %v1768
  %v1770 = vsub.f32 1.0, %v1769
  %v1771 = vmul.f32 %v1768, %v1770
  %v1772 = vadd.f32 %v1768, %v1771
  %vm1773 = vweird.f32 %v1526
  %vm1774 = vweird.f32 %v1768
  %vm1775 = vmor %vm1773, %vm1774
  %v1776 = vsel %vm1775, %v1768, %v1772
  %v1777 = vand.u32 2147483647, %v1526
  %vm1778 = vcmp.eq.f32.partialorder %v1777, 8.507059e+37
  %v1779 = vand.u32 %v1526, 2147483648
  %v1780 = vor.u32 1.1754944e-38, %v1779
  %v1781 = vsel %vm1778, %v1780, %v1776
  %v1782 = vmul.f32 1.0, %v1781
  %v1783 = vrcp.pop %v1527
  %v1784 = vmul.f32 %v1527, %v1783
  %v1785 = vsub.f32 1.0, %v1784
  %v1786 = vmul.f32 %v1783, %v1785
  %v1787 = vadd.f32 %v1783, %v1786
  %vm1788 = vweird.f32 %v1527
  %vm1789 = vweird.f32 %v1783
  %vm1790 = vmor %vm1788, %vm1789
  %v1791 = vsel %vm1790, %v1783, %v1787
  %v1792 = vand.u32 2147483647, %v1527
  %vm1793 = vcmp.eq.f32.partialorder %v1792, 8.507059e+37
  %v1794 = vand.u32 %v1527, 2147483648
  %v1795 = vor.u32 1.1754944e-38, %v1794
  %v1796 = vsel %vm1793, %v1795, %v1791
  %v1797 = vmul.f32 1.0, %v1796
  %v1798 = vrcp.pop %v1528
  %v1799 = vmul.f32 %v1528, %v1798
  %v1800 = vsub.f32 1.0, %v1799
  %v1801 = vmul.f32 %v1798, %v1800
  %v1802 = vadd.f32 %v1798, %v1801
  %vm1803 = vweird.f32 %v1528
  %vm1804 = vweird.f32 %v1798
  %vm1805 = vmor %vm1803, %vm1804
  %v1806 = vsel %vm1805, %v1798, %v1802
  %v1807 = vand.u32 2147483647, %v1528
  %vm1808 = vcmp.eq.f32.partialorder %v1807, 8.507059e+37
  %v1809 = vand.u32 %v1528, 2147483648
  %v1810 = vor.u32 1.1754944e-38, %v1809
  %v1811 = vsel %vm1808, %v1810, %v1806
  %v1812 = vmul.f32 1.0, %v1811
  %v1813 = vrcp.pop %v1529
  %v1814 = vmul.f32 %v1529, %v1813
  %v1815 = vsub.f32 1.0, %v1814
  %v1816 = vmul.f32 %v1813, %v1815
  %v1817 = vadd.f32 %v1813, %v1816
  %vm1818 = vweird.f32 %v1529
  %vm1819 = vweird.f32 %v1813
  %vm1820 = vmor %vm1818, %vm1819
  %v1821 = vsel %vm1820, %v1813, %v1817
  %v1822 = vand.u32 2147483647, %v1529
  %vm1823 = vcmp.eq.f32.partialorder %v1822, 8.507059e+37
  %v1824 = vand.u32 %v1529, 2147483648
  %v1825 = vor.u32 1.1754944e-38, %v1824
  %v1826 = vsel %vm1823, %v1825, %v1821
  %v1827 = vmul.f32 1.0, %v1826
  %v1828 = vrcp.pop %v1530
  %v1829 = vmul.f32 %v1530, %v1828
  %v1830 = vsub.f32 1.0, %v1829
  %v1831 = vmul.f32 %v1828, %v1830
  %v1832 = vadd.f32 %v1828, %v1831
  %vm1833 = vweird.f32 %v1530
  %vm1834 = vweird.f32 %v1828
  %vm1835 = vmor %vm1833, %vm1834
  %v1836 = vsel %vm1835, %v1828, %v1832
  %v1837 = vand.u32 2147483647, %v1530
  %vm1838 = vcmp.eq.f32.partialorder %v1837, 8.507059e+37
  %v1839 = vand.u32 %v1530, 2147483648
  %v1840 = vor.u32 1.1754944e-38, %v1839
  %v1841 = vsel %vm1838, %v1840, %v1836
  %v1842 = vmul.f32 1.0, %v1841
  %v1843 = vrcp.pop %v1531
  %v1844 = vmul.f32 %v1531, %v1843
  %v1845 = vsub.f32 1.0, %v1844
  %v1846 = vmul.f32 %v1843, %v1845
  %v1847 = vadd.f32 %v1843, %v1846
  %vm1848 = vweird.f32 %v1531
  %vm1849 = vweird.f32 %v1843
  %vm1850 = vmor %vm1848, %vm1849
  %v1851 = vsel %vm1850, %v1843, %v1847
  %v1852 = vand.u32 2147483647, %v1531
  %vm1853 = vcmp.eq.f32.partialorder %v1852, 8.507059e+37
  %v1854 = vand.u32 %v1531, 2147483648
  %v1855 = vor.u32 1.1754944e-38, %v1854
  %v1856 = vsel %vm1853, %v1855, %v1851
  %v1857 = vmul.f32 1.0, %v1856
  %v1858 = vrcp.pop %v1532
  %v1859 = vmul.f32 %v1532, %v1858
  %v1860 = vsub.f32 1.0, %v1859
  %v1861 = vmul.f32 %v1858, %v1860
  %v1862 = vadd.f32 %v1858, %v1861
  %vm1863 = vweird.f32 %v1532
  %vm1864 = vweird.f32 %v1858
  %vm1865 = vmor %vm1863, %vm1864
  %v1866 = vsel %vm1865, %v1858, %v1862
  %v1867 = vand.u32 2147483647, %v1532
  %vm1868 = vcmp.eq.f32.partialorder %v1867, 8.507059e+37
  %v1869 = vand.u32 %v1532, 2147483648
  %v1870 = vor.u32 1.1754944e-38, %v1869
  %v1871 = vsel %vm1868, %v1870, %v1866
  %v1872 = vmul.f32 1.0, %v1871
  %v1873 = vrcp.pop %v1533
  %v1874 = vmul.f32 %v1533, %v1873
  %v1875 = vsub.f32 1.0, %v1874
  %v1876 = vmul.f32 %v1873, %v1875
  %v1877 = vadd.f32 %v1873, %v1876
  %vm1878 = vweird.f32 %v1533
  %vm1879 = vweird.f32 %v1873
  %vm1880 = vmor %vm1878, %vm1879
  %v1881 = vsel %vm1880, %v1873, %v1877
  %v1882 = vand.u32 2147483647, %v1533
  %vm1883 = vcmp.eq.f32.partialorder %v1882, 8.507059e+37
  %v1884 = vand.u32 %v1533, 2147483648
  %v1885 = vor.u32 1.1754944e-38, %v1884
  %v1886 = vsel %vm1883, %v1885, %v1881
  %v1887 = vmul.f32 1.0, %v1886
  %v1888 = vrcp.pop %v1534
  %v1889 = vmul.f32 %v1534, %v1888
  %v1890 = vsub.f32 1.0, %v1889
  %v1891 = vmul.f32 %v1888, %v1890
  %v1892 = vadd.f32 %v1888, %v1891
  %vm1893 = vweird.f32 %v1534
  %vm1894 = vweird.f32 %v1888
  %vm1895 = vmor %vm1893, %vm1894
  %v1896 = vsel %vm1895, %v1888, %v1892
  %v1897 = vand.u32 2147483647, %v1534
  %vm1898 = vcmp.eq.f32.partialorder %v1897, 8.507059e+37
  %v1899 = vand.u32 %v1534, 2147483648
  %v1900 = vor.u32 1.1754944e-38, %v1899
  %v1901 = vsel %vm1898, %v1900, %v1896
  %v1902 = vmul.f32 1.0, %v1901
  %v1903 = vrcp.pop %v1535
  %v1904 = vmul.f32 %v1535, %v1903
  %v1905 = vsub.f32 1.0, %v1904
  %v1906 = vmul.f32 %v1903, %v1905
  %v1907 = vadd.f32 %v1903, %v1906
  %vm1908 = vweird.f32 %v1535
  %vm1909 = vweird.f32 %v1903
  %vm1910 = vmor %vm1908, %vm1909
  %v1911 = vsel %vm1910, %v1903, %v1907
  %v1912 = vand.u32 2147483647, %v1535
  %vm1913 = vcmp.eq.f32.partialorder %v1912, 8.507059e+37
  %v1914 = vand.u32 %v1535, 2147483648
  %v1915 = vor.u32 1.1754944e-38, %v1914
  %v1916 = vsel %vm1913, %v1915, %v1911
  %v1917 = vmul.f32 1.0, %v1916
  %v1918 = vrcp.pop %v1536
  %v1919 = vmul.f32 %v1536, %v1918
  %v1920 = vsub.f32 1.0, %v1919
  %v1921 = vmul.f32 %v1918, %v1920
  %v1922 = vadd.f32 %v1918, %v1921
  %vm1923 = vweird.f32 %v1536
  %vm1924 = vweird.f32 %v1918
  %vm1925 = vmor %vm1923, %vm1924
  %v1926 = vsel %vm1925, %v1918, %v1922
  %v1927 = vand.u32 2147483647, %v1536
  %vm1928 = vcmp.eq.f32.partialorder %v1927, 8.507059e+37
  %v1929 = vand.u32 %v1536, 2147483648
  %v1930 = vor.u32 1.1754944e-38, %v1929
  %v1931 = vsel %vm1928, %v1930, %v1926
  %v1932 = vmul.f32 1.0, %v1931
  %v1933 = vrcp.pop %v1537
  %v1934 = vmul.f32 %v1537, %v1933
  %v1935 = vsub.f32 1.0, %v1934
  %v1936 = vmul.f32 %v1933, %v1935
  %v1937 = vadd.f32 %v1933, %v1936
  %vm1938 = vweird.f32 %v1537
  %vm1939 = vweird.f32 %v1933
  %vm1940 = vmor %vm1938, %vm1939
  %v1941 = vsel %vm1940, %v1933, %v1937
  %v1942 = vand.u32 2147483647, %v1537
  %vm1943 = vcmp.eq.f32.partialorder %v1942, 8.507059e+37
  %v1944 = vand.u32 %v1537, 2147483648
  %v1945 = vor.u32 1.1754944e-38, %v1944
  %v1946 = vsel %vm1943, %v1945, %v1941
  %v1947 = vmul.f32 1.0, %v1946
  %v1948 = vrcp.pop %v1538
  %v1949 = vmul.f32 %v1538, %v1948
  %v1950 = vsub.f32 1.0, %v1949
  %v1951 = vmul.f32 %v1948, %v1950
  %v1952 = vadd.f32 %v1948, %v1951
  %vm1953 = vweird.f32 %v1538
  %vm1954 = vweird.f32 %v1948
  %vm1955 = vmor %vm1953, %vm1954
  %v1956 = vsel %vm1955, %v1948, %v1952
  %v1957 = vand.u32 2147483647, %v1538
  %vm1958 = vcmp.eq.f32.partialorder %v1957, 8.507059e+37
  %v1959 = vand.u32 %v1538, 2147483648
  %v1960 = vor.u32 1.1754944e-38, %v1959
  %v1961 = vsel %vm1958, %v1960, %v1956
  %v1962 = vmul.f32 1.0, %v1961
  %v1963 = vrcp.pop %v1539
  %v1964 = vmul.f32 %v1539, %v1963
  %v1965 = vsub.f32 1.0, %v1964
  %v1966 = vmul.f32 %v1963, %v1965
  %v1967 = vadd.f32 %v1963, %v1966
  %vm1968 = vweird.f32 %v1539
  %vm1969 = vweird.f32 %v1963
  %vm1970 = vmor %vm1968, %vm1969
  %v1971 = vsel %vm1970, %v1963, %v1967
  %v1972 = vand.u32 2147483647, %v1539
  %vm1973 = vcmp.eq.f32.partialorder %v1972, 8.507059e+37
  %v1974 = vand.u32 %v1539, 2147483648
  %v1975 = vor.u32 1.1754944e-38, %v1974
  %v1976 = vsel %vm1973, %v1975, %v1971
  %v1977 = vmul.f32 1.0, %v1976
  %v1978 = vrcp.pop %v1540
  %v1979 = vmul.f32 %v1540, %v1978
  %v1980 = vsub.f32 1.0, %v1979
  %v1981 = vmul.f32 %v1978, %v1980
  %v1982 = vadd.f32 %v1978, %v1981
  %vm1983 = vweird.f32 %v1540
  %vm1984 = vweird.f32 %v1978
  %vm1985 = vmor %vm1983, %vm1984
  %v1986 = vsel %vm1985, %v1978, %v1982
  %v1987 = vand.u32 2147483647, %v1540
  %vm1988 = vcmp.eq.f32.partialorder %v1987, 8.507059e+37
  %v1989 = vand.u32 %v1540, 2147483648
  %v1990 = vor.u32 1.1754944e-38, %v1989
  %v1991 = vsel %vm1988, %v1990, %v1986
  %v1992 = vmul.f32 1.0, %v1991
  %v1993 = vrcp.pop %v1541
  %v1994 = vmul.f32 %v1541, %v1993
  %v1995 = vsub.f32 1.0, %v1994
  %v1996 = vmul.f32 %v1993, %v1995
  %v1997 = vadd.f32 %v1993, %v1996
  %vm1998 = vweird.f32 %v1541
  %vm1999 = vweird.f32 %v1993
  %vm2000 = vmor %vm1998, %vm1999
  %v2001 = vsel %vm2000, %v1993, %v1997
  %v2002 = vand.u32 2147483647, %v1541
  %vm2003 = vcmp.eq.f32.partialorder %v2002, 8.507059e+37
  %v2004 = vand.u32 %v1541, 2147483648
  %v2005 = vor.u32 1.1754944e-38, %v2004
  %v2006 = vsel %vm2003, %v2005, %v2001
  %v2007 = vmul.f32 1.0, %v2006
  %v2008 = vrcp.pop %v1542
  %v2009 = vmul.f32 %v1542, %v2008
  %v2010 = vsub.f32 1.0, %v2009
  %v2011 = vmul.f32 %v2008, %v2010
  %v2012 = vadd.f32 %v2008, %v2011
  %vm2013 = vweird.f32 %v1542
  %vm2014 = vweird.f32 %v2008
  %vm2015 = vmor %vm2013, %vm2014
  %v2016 = vsel %vm2015, %v2008, %v2012
  %v2017 = vand.u32 2147483647, %v1542
  %vm2018 = vcmp.eq.f32.partialorder %v2017, 8.507059e+37
  %v2019 = vand.u32 %v1542, 2147483648
  %v2020 = vor.u32 1.1754944e-38, %v2019
  %v2021 = vsel %vm2018, %v2020, %v2016
  %v2022 = vmul.f32 1.0, %v2021
  %v2023 = vld [vmem:[%s5] sm:$0xff]
  %v2024 = vld [vmem:[%s5 + $0x8] sm:$0xff]
  %v2025 = vld [vmem:[%s5 + $0x10] sm:$0xff]
  %v2026 = vld [vmem:[%s5 + $0x18] sm:$0xff]
  %v2027 = vld [vmem:[%s5 + $0x20] sm:$0xff]
  %v2028 = vld [vmem:[%s5 + $0x28] sm:$0xff]
  %v2029 = vld [vmem:[%s5 + $0x30] sm:$0xff]
  %v2030 = vld [vmem:[%s5 + $0x38] sm:$0xff]
  %v2031 = vld [vmem:[%s5 + $0x40] sm:$0xff]
  %v2032 = vld [vmem:[%s5 + $0x48] sm:$0xff]
  %v2033 = vld [vmem:[%s5 + $0x50] sm:$0xff]
  %v2034 = vld [vmem:[%s5 + $0x58] sm:$0xff]
  %v2035 = vld [vmem:[%s5 + $0x60] sm:$0xff]
  %v2036 = vld [vmem:[%s5 + $0x68] sm:$0xff]
  %v2037 = vld [vmem:[%s5 + $0x70] sm:$0xff]
  %v2038 = vld [vmem:[%s5 + $0x78] sm:$0xff]
  %v2039 = vld [vmem:[%s6] sm:$0x1]
  %v2041 = vperm.slane %v2039, 0
  %2043 = vmatpush.msra.mxu0 %v2038
  %2044 = vmatpush.msra.mxu0 %v2037
  %2045 = vmatpush.msra.mxu0 %v2036
  %2046 = vmatpush.msra.mxu0 %v2035
  %2047 = vmatpush.msra.mxu0 %v2034
  %2048 = vmatpush.msra.mxu0 %v2033
  %2049 = vmatpush.msra.mxu0 %v2032
  %2050 = vmatpush.msra.mxu0 %v2031
  %2051 = vmatpush.msra.mxu0 %v2030
  %2052 = vmatpush.msra.mxu0 %v2029
  %2053 = vmatpush.msra.mxu0 %v2028
  %2054 = vmatpush.msra.mxu0 %v2027
  %2055 = vmatpush.msra.mxu0 %v2026
  %2056 = vmatpush.msra.mxu0 %v2025
  %2057 = vmatpush.msra.mxu0 %v2024
  %2058 = vmatpush.msra.mxu0 %v2023
  %2059 = vmatmul.f32.gmra.mxu0 %v1557
  %v2060 = vpop.f32.mrf.mxu0
  %v2061 = vadd.f32 %v2041, %v2060
  %2062 = vmatmul.f32.gmra.mxu0 %v1572
  %v2063 = vpop.f32.mrf.mxu0
  %v2064 = vadd.f32 %v2041, %v2063
  %2065 = vmatmul.f32.gmra.mxu0 %v1587
  %v2066 = vpop.f32.mrf.mxu0
  %v2067 = vadd.f32 %v2041, %v2066
  %2068 = vmatmul.f32.gmra.mxu0 %v1602
  %v2069 = vpop.f32.mrf.mxu0
  %v2070 = vadd.f32 %v2041, %v2069
  %2071 = vmatmul.f32.gmra.mxu0 %v1617
  %v2072 = vpop.f32.mrf.mxu0
  %v2073 = vadd.f32 %v2041, %v2072
  %2074 = vmatmul.f32.gmra.mxu0 %v1632
  %v2075 = vpop.f32.mrf.mxu0
  %v2076 = vadd.f32 %v2041, %v2075
  %2077 = vmatmul.f32.gmra.mxu0 %v1647
  %v2078 = vpop.f32.mrf.mxu0
  %v2079 = vadd.f32 %v2041, %v2078
  %2080 = vmatmul.f32.gmra.mxu0 %v1662
  %v2081 = vpop.f32.mrf.mxu0
  %v2082 = vadd.f32 %v2041, %v2081
  %2083 = vmatmul.f32.gmra.mxu0 %v1677
  %v2084 = vpop.f32.mrf.mxu0
  %v2085 = vadd.f32 %v2041, %v2084
  %2086 = vmatmul.f32.gmra.mxu0 %v1692
  %v2087 = vpop.f32.mrf.mxu0
  %v2088 = vadd.f32 %v2041, %v2087
  %2089 = vmatmul.f32.gmra.mxu0 %v1707
  %v2090 = vpop.f32.mrf.mxu0
  %v2091 = vadd.f32 %v2041, %v2090
  %2092 = vmatmul.f32.gmra.mxu0 %v1722
  %v2093 = vpop.f32.mrf.mxu0
  %v2094 = vadd.f32 %v2041, %v2093
  %2095 = vmatmul.f32.gmra.mxu0 %v1737
  %v2096 = vpop.f32.mrf.mxu0
  %v2097 = vadd.f32 %v2041, %v2096
  %2098 = vmatmul.f32.gmra.mxu0 %v1752
  %v2099 = vpop.f32.mrf.mxu0
  %v2100 = vadd.f32 %v2041, %v2099
  %2101 = vmatmul.f32.gmra.mxu0 %v1767
  %v2102 = vpop.f32.mrf.mxu0
  %v2103 = vadd.f32 %v2041, %v2102
  %2104 = vmatmul.f32.gmra.mxu0 %v1782
  %v2105 = vpop.f32.mrf.mxu0
  %v2106 = vadd.f32 %v2041, %v2105
  %2107 = vmatmul.f32.gmra.mxu0 %v1797
  %v2108 = vpop.f32.mrf.mxu0
  %v2109 = vadd.f32 %v2041, %v2108
  %2110 = vmatmul.f32.gmra.mxu0 %v1812
  %v2111 = vpop.f32.mrf.mxu0
  %v2112 = vadd.f32 %v2041, %v2111
  %2113 = vmatmul.f32.gmra.mxu0 %v1827
  %v2114 = vpop.f32.mrf.mxu0
  %v2115 = vadd.f32 %v2041, %v2114
  %2116 = vmatmul.f32.gmra.mxu0 %v1842
  %v2117 = vpop.f32.mrf.mxu0
  %v2118 = vadd.f32 %v2041, %v2117
  %2119 = vmatmul.f32.gmra.mxu0 %v1857
  %v2120 = vpop.f32.mrf.mxu0
  %v2121 = vadd.f32 %v2041, %v2120
  %2122 = vmatmul.f32.gmra.mxu0 %v1872
  %v2123 = vpop.f32.mrf.mxu0
  %v2124 = vadd.f32 %v2041, %v2123
  %2125 = vmatmul.f32.gmra.mxu0 %v1887
  %v2126 = vpop.f32.mrf.mxu0
  %v2127 = vadd.f32 %v2041, %v2126
  %2128 = vmatmul.f32.gmra.mxu0 %v1902
  %v2129 = vpop.f32.mrf.mxu0
  %v2130 = vadd.f32 %v2041, %v2129
  %2131 = vmatmul.f32.gmra.mxu0 %v1917
  %v2132 = vpop.f32.mrf.mxu0
  %v2133 = vadd.f32 %v2041, %v2132
  %2134 = vmatmul.f32.gmra.mxu0 %v1932
  %v2135 = vpop.f32.mrf.mxu0
  %v2136 = vadd.f32 %v2041, %v2135
  %2137 = vmatmul.f32.gmra.mxu0 %v1947
  %v2138 = vpop.f32.mrf.mxu0
  %v2139 = vadd.f32 %v2041, %v2138
  %2140 = vmatmul.f32.gmra.mxu0 %v1962
  %v2141 = vpop.f32.mrf.mxu0
  %v2142 = vadd.f32 %v2041, %v2141
  %2143 = vmatmul.f32.gmra.mxu0 %v1977
  %v2144 = vpop.f32.mrf.mxu0
  %v2145 = vadd.f32 %v2041, %v2144
  %2146 = vmatmul.f32.gmra.mxu0 %v1992
  %v2147 = vpop.f32.mrf.mxu0
  %v2148 = vadd.f32 %v2041, %v2147
  %2149 = vmatmul.f32.gmra.mxu0 %v2007
  %v2150 = vpop.f32.mrf.mxu0
  %v2151 = vadd.f32 %v2041, %v2150
  %2152 = vmatmul.f32.gmra.mxu0 %v2022
  %v2153 = vpop.f32.mrf.mxu0
  %v2154 = vadd.f32 %v2041, %v2153
  %2155 = vdwg.mxu0
  %vm2156 = vcmask 15360
  %2157 = vst.msk [vmem:[%s7] sm:$0xff] %vm2156, %v2061
  %2158 = vst.msk [vmem:[%s7 + $0x8] sm:$0xff] %vm2156, %v2064
  %2159 = vst.msk [vmem:[%s7 + $0x10] sm:$0xff] %vm2156, %v2067
  %2160 = vst.msk [vmem:[%s7 + $0x18] sm:$0xff] %vm2156, %v2070
  %2161 = vst.msk [vmem:[%s7 + $0x20] sm:$0xff] %vm2156, %v2073
  %2162 = vst.msk [vmem:[%s7 + $0x28] sm:$0xff] %vm2156, %v2076
  %2163 = vst.msk [vmem:[%s7 + $0x30] sm:$0xff] %vm2156, %v2079
  %2164 = vst.msk [vmem:[%s7 + $0x38] sm:$0xff] %vm2156, %v2082
  %2165 = vst.msk [vmem:[%s7 + $0x40] sm:$0xff] %vm2156, %v2085
  %2166 = vst.msk [vmem:[%s7 + $0x48] sm:$0xff] %vm2156, %v2088
  %2167 = vst.msk [vmem:[%s7 + $0x50] sm:$0xff] %vm2156, %v2091
  %2168 = vst.msk [vmem:[%s7 + $0x58] sm:$0xff] %vm2156, %v2094
  %2169 = vst.msk [vmem:[%s7 + $0x60] sm:$0xff] %vm2156, %v2097
  %2170 = vst.msk [vmem:[%s7 + $0x68] sm:$0xff] %vm2156, %v2100
  %2171 = vst.msk [vmem:[%s7 + $0x70] sm:$0xff] %vm2156, %v2103
  %2172 = vst.msk [vmem:[%s7 + $0x78] sm:$0xff] %vm2156, %v2106
  %2173 = vst.msk [vmem:[%s7 + $0x80] sm:$0xff] %vm2156, %v2109
  %2174 = vst.msk [vmem:[%s7 + $0x88] sm:$0xff] %vm2156, %v2112
  %2175 = vst.msk [vmem:[%s7 + $0x90] sm:$0xff] %vm2156, %v2115
  %2176 = vst.msk [vmem:[%s7 + $0x98] sm:$0xff] %vm2156, %v2118
  %2177 = vst.msk [vmem:[%s7 + $0xa0] sm:$0xff] %vm2156, %v2121
  %2178 = vst.msk [vmem:[%s7 + $0xa8] sm:$0xff] %vm2156, %v2124
  %2179 = vst.msk [vmem:[%s7 + $0xb0] sm:$0xff] %vm2156, %v2127
  %2180 = vst.msk [vmem:[%s7 + $0xb8] sm:$0xff] %vm2156, %v2130
  %2181 = vst.msk [vmem:[%s7 + $0xc0] sm:$0xff] %vm2156, %v2133
  %2182 = vst.msk [vmem:[%s7 + $0xc8] sm:$0xff] %vm2156, %v2136
  %2183 = vst.msk [vmem:[%s7 + $0xd0] sm:$0xff] %vm2156, %v2139
  %2184 = vst.msk [vmem:[%s7 + $0xd8] sm:$0xff] %vm2156, %v2142
  %2185 = vst.msk [vmem:[%s7 + $0xe0] sm:$0xff] %vm2156, %v2145
  %2186 = vst.msk [vmem:[%s7 + $0xe8] sm:$0xff] %vm2156, %v2148
  %2187 = vst.msk [vmem:[%s7 + $0xf0] sm:$0xff] %vm2156, %v2151
  %2188 = vst.msk [vmem:[%s7 + $0xf8] sm:$0xff] %vm2156, %v2154
  // Predicated region
  $region30: #{agent_forward.1} parent=0 // pred_check
    _
  $region31: #{agent_forward.1} parent=0 // pred_check_branch
    %2190 = sbr.rel (0) target = $region33
  $region32: #{agent_forward.1} parent=0 // pred_region
    _
  $region33: #{agent_forward.1} parent=0 // pred_fallthru
    _
  // Predicated region
  $region34: #{agent_forward.1} parent=0 // pred_check
    _
  $region35: #{agent_forward.1} parent=0 // pred_check_branch
    %2192 = sbr.rel (0) target = $region37
  $region36: #{agent_forward.1} parent=0 // pred_region
    _
  $region37: #{agent_forward.1} parent=0 // pred_fallthru
    _

</llo_original>
